<compile_context>
chip_gen: v6e
topology: v6e:2x2x1
jax: 0.10.0
libtpu: 0.0.40
codegen_flags: <defaults>
</compile_context>

<pallas_src>
import functools

import jax
import jax.numpy as jnp
from jax.experimental import pallas as pl
from jax.experimental.pallas import tpu as pltpu


# ----------------------------- in-kernel helpers -----------------------------

def _erf(x):
    # Abramowitz & Stegun 7.1.26 (max abs err ~1.5e-7); elementwise ops only.
    a1, a2, a3, a4, a5 = 0.254829592, -0.284496736, 1.421413741, -1.453152027, 1.061405429
    p = 0.3275911
    s = jnp.where(x >= 0.0, 1.0, -1.0)
    ax = jnp.abs(x)
    t = pl.reciprocal(1.0 + p * ax)          # EUP reciprocal, not a VPU divide
    poly = ((((a5 * t + a4) * t + a3) * t + a2) * t + a1) * t
    return s * (1.0 - poly * jnp.exp(-ax * ax))


def _gelu_exact(x):
    # nn.GELU() default (erf-based).
    return 0.5 * x * (1.0 + _erf(x * 0.7071067811865476))


def _layernorm(x, g, b, eps=1e-5):
    mu = jnp.mean(x, axis=-1, keepdims=True)
    var = jnp.mean((x - mu) ** 2, axis=-1, keepdims=True)
    return (x - mu) * jax.lax.rsqrt(var + eps) * g + b


# --------------------------------- kernel ------------------------------------

def block_kernel(x_ref, ln1g_ref, ln1b_ref, wq_ref, wk_ref, wv_ref, wprojh_ref,
                 bproj_ref, bias_ref, ln2g_ref, ln2b_ref, w1_ref, b1_ref,
                 w2_ref, b2_ref, o_ref, *, num_heads, head_dim, block_batch,
                 tokens):
    H, hd, Bt, N = num_heads, head_dim, block_batch, tokens
    C = H * hd
    BtN = Bt * N

    x = x_ref[...]                                            # (Bt*N, C) f32

    # ------------------------- attention branch -------------------------
    xn = _layernorm(x, ln1g_ref[0], ln1b_ref[0])              # f32
    xb = xn.astype(jnp.bfloat16)                              # bf16 MXU feed

    # Wq already carries the 1/sqrt(hd) scale (folded host-side, once).
    q = jnp.dot(xb, wq_ref[...], preferred_element_type=jnp.float32)
    k = jnp.dot(xb, wk_ref[...], preferred_element_type=jnp.float32)
    v = jnp.dot(xb, wv_ref[...], preferred_element_type=jnp.float32)
    q = q.astype(jnp.bfloat16).reshape(Bt, N, C)
    k = k.astype(jnp.bfloat16).reshape(Bt, N, C)
    v = v.astype(jnp.bfloat16).reshape(Bt, N, C)

    # Head-concat folded into the projection: the accumulator is a lane-dense
    # (Bt*N, C) f32 value — no head_dim-wide masked VMEM stores anywhere.
    attn = jnp.zeros((BtN, C), jnp.float32)
    for h in range(H):                                        # static, small
        sl = slice(h * hd, (h + 1) * hd)
        qh, kh, vh = q[:, :, sl], k[:, :, sl], v[:, :, sl]    # (Bt, N, hd) bf16
        s = jnp.einsum('bnd,bmd->bnm', qh, kh,
                       preferred_element_type=jnp.float32)    # (Bt, N, N) f32
        s = s + bias_ref[h][None]                             # relative bias
        s = s - jnp.max(s, axis=-1, keepdims=True)
        e = jnp.exp(s)
        p = e * pl.reciprocal(jnp.sum(e, axis=-1, keepdims=True), approx=True)
        oh = jnp.einsum('bnm,bmd->bnd', p.astype(jnp.bfloat16), vh,
                        preferred_element_type=jnp.float32)   # (Bt, N, hd)
        attn = attn + jnp.dot(oh.reshape(BtN, hd).astype(jnp.bfloat16),
                              wprojh_ref[h],                  # (hd, C) bf16
                              preferred_element_type=jnp.float32)
    x1 = x + attn + bproj_ref[0]

    # ---------------------------- MLP branch ----------------------------
    x1n = _layernorm(x1, ln2g_ref[0], ln2b_ref[0])
    h1 = jnp.dot(x1n.astype(jnp.bfloat16), w1_ref[...],
                 preferred_element_type=jnp.float32) + b1_ref[0]
    h1 = _gelu_exact(h1)                                      # f32 elementwise
    # Dropout layers are identity at inference time (eval mode).
    h2 = jnp.dot(h1.astype(jnp.bfloat16), w2_ref[...],
                 preferred_element_type=jnp.float32) + b2_ref[0]

    o_ref[...] = (x1 + h2).astype(o_ref.dtype)                # lane-dense store


# ----------------------------- parameter prep --------------------------------

def prepare_params(params, num_heads):
    """One-time host-side prep: split QKV, fold attention scale into Wq,
    reshape Wproj head-major, cast matmul weights to bf16."""
    C = params["wqkv"].shape[0]
    hd = C // num_heads
    scale = hd ** -0.5
    return dict(
        ln1_g=params["ln1_g"].astype(jnp.float32),
        ln1_b=params["ln1_b"].astype(jnp.float32),
        wq=(params["wqkv"][:, :C] * scale).astype(jnp.bfloat16),
        wk=params["wqkv"][:, C:2 * C].astype(jnp.bfloat16),
        wv=params["wqkv"][:, 2 * C:].astype(jnp.bfloat16),
        wproj_h=params["wproj"].reshape(num_heads, hd, C).astype(jnp.bfloat16),
        bproj=params["bproj"].astype(jnp.float32),
        ln2_g=params["ln2_g"].astype(jnp.float32),
        ln2_b=params["ln2_b"].astype(jnp.float32),
        w1=params["w1"].astype(jnp.bfloat16),
        b1=params["b1"].astype(jnp.float32),
        w2=params["w2"].astype(jnp.bfloat16),
        b2=params["b2"].astype(jnp.float32),
    )


def _pick_block_batch(B, N, max_rows=1024):
    """Largest divisor of B whose folded token slab stays a modest size."""
    bt = 1
    for cand in range(1, B + 1):
        if B % cand == 0 and cand * N <= max_rows:
            bt = cand
    return bt


# --------------------------------- wrapper -----------------------------------

def relative_transformer_block(x, kparams, rel_bias, num_heads, block_batch=None):
    B, N, C = x.shape
    H = num_heads
    hd = C // H
    hidden = kparams["w1"].shape[1]

    Bt = _pick_block_batch(B, N) if block_batch is None else block_batch
    assert B % Bt == 0

    kernel = functools.partial(block_kernel, num_heads=H, head_dim=hd,
                               block_batch=Bt, tokens=N)

    def full(shape):
        nd = len(shape)
        return pl.BlockSpec(shape, lambda i, _nd=nd: (0,) * _nd)

    in_specs = [
        pl.BlockSpec((Bt * N, C), lambda i: (i, 0)),   # x  (tokens folded)
        full((1, C)), full((1, C)),                    # ln1 gamma / beta
        full((C, C)), full((C, C)), full((C, C)),      # Wq (pre-scaled) / Wk / Wv
        full((H, hd, C)), full((1, C)),                # head-major Wproj / bias
        full((H, N, N)),                               # relative bias (per head)
        full((1, C)), full((1, C)),                    # ln2 gamma / beta
        full((C, hidden)), full((1, hidden)),          # mlp fc1
        full((hidden, C)), full((1, C)),               # mlp fc2
    ]

    # VMEM budget: double-buffered x/out slabs, resident (pipelined x2)
    # weights + bias, plus headroom for f32 intermediates; capped at 64 MiB so
    # the same setting is legal on v7x's per-TC VMEM.
    f32b, bf16b = 4, 2
    blk = Bt * N * C * f32b
    weights = ((3 * C * C + H * hd * C + C * hidden + hidden * C) * bf16b
               + (6 * C + hidden) * f32b + H * N * N * f32b)
    interm = Bt * N * (8 * C + 2 * hidden) * f32b + Bt * N * N * 2 * f32b
    vmem_limit = int(min(64 * 1024 * 1024,
                         max(8 * 1024 * 1024,
                             4 * blk + 2 * weights + interm + (2 << 20))))

    out = pl.pallas_call(
        kernel,
        out_shape=jax.ShapeDtypeStruct((B * N, C), x.dtype),
        grid=(B // Bt,),
        in_specs=in_specs,
        out_specs=pl.BlockSpec((Bt * N, C), lambda i: (i, 0)),
        compiler_params=pltpu.CompilerParams(
            dimension_semantics=("parallel",),
            vmem_limit_bytes=vmem_limit),
    )(x.reshape(B * N, C), kparams["ln1_g"], kparams["ln1_b"],
      kparams["wq"], kparams["wk"], kparams["wv"], kparams["wproj_h"],
      kparams["bproj"], rel_bias, kparams["ln2_g"], kparams["ln2_b"],
      kparams["w1"], kparams["b1"], kparams["w2"], kparams["b2"])
    return out.reshape(B, N, C)


# ------------------------- relative bias construction ------------------------

def build_relative_index(max_dist):
    coords = jnp.stack(
        jnp.meshgrid(jnp.arange(max_dist), jnp.arange(max_dist), indexing="ij"),
        axis=0)                                     # (2, M, M)
    coords_flat = coords.reshape(2, -1)             # (2, M*M)
    rel = coords_flat[:, :, None] - coords_flat[:, None, :]
    rel = jnp.transpose(rel, (1, 2, 0)) + (max_dist - 1)
    return rel[:, :, 0] * (2 * max_dist - 1) + rel[:, :, 1]   # (M*M, M*M)


def gather_relative_bias(table, rel_index, N, num_heads):
    # Host-side gather; the resulting (H, N, N) bias is kept resident in VMEM.
    bias = table[rel_index[:N, :N].reshape(-1)]                # (N*N, H)
    return jnp.transpose(bias.reshape(N, N, num_heads), (2, 0, 1))


# ----------------------------- pure-JAX reference ----------------------------

def reference(x, params, rel_bias, num_heads):
    B, N, C = x.shape
    hd = C // num_heads

    def ln(v, g, b):
        mu = v.mean(-1, keepdims=True)
        var = ((v - mu) ** 2).mean(-1, keepdims=True)
        return (v - mu) / jnp.sqrt(var + 1e-5) * g + b

    xn = ln(x, params["ln1_g"][0], params["ln1_b"][0])
    qkv = (xn @ params["wqkv"]).reshape(B, N, 3, num_heads, hd)
    q = jnp.transpose(qkv[:, :, 0], (0, 2, 1, 3))
    k = jnp.transpose(qkv[:, :, 1], (0, 2, 1, 3))
    v = jnp.transpose(qkv[:, :, 2], (0, 2, 1, 3))
    attn = jnp.einsum("bhnd,bhmd->bhnm", q, k) * hd ** -0.5 + rel_bias[None]
    attn = jax.nn.softmax(attn, axis=-1)
    o = jnp.einsum("bhnm,bhmd->bhnd", attn, v)
    o = jnp.transpose(o, (0, 2, 1, 3)).reshape(B, N, C)
    x1 = x + o @ params["wproj"] + params["bproj"][0]
    x1n = ln(x1, params["ln2_g"][0], params["ln2_b"][0])
    h = jax.nn.gelu(x1n @ params["w1"] + params["b1"][0], approximate=False)
    return x1 + h @ params["w2"] + params["b2"][0]


# ----------------------------------- main ------------------------------------

if __name__ == "__main__":
    B, N, C = 2, 16, 32
    num_heads = 4
    mlp_ratio = 4.0
    hidden = int(C * mlp_ratio)
    max_rel_distance = 16          # >= N; keeps the table small for this demo

    key = jax.random.PRNGKey(0)
    ks = jax.random.split(key, 12)

    params = {
        "ln1_g": 1.0 + 0.1 * jax.random.normal(ks[0], (1, C), jnp.float32),
        "ln1_b": 0.1 * jax.random.normal(ks[1], (1, C), jnp.float32),
        "wqkv":  0.05 * jax.random.normal(ks[2], (C, 3 * C), jnp.float32),
        "wproj": 0.05 * jax.random.normal(ks[3], (C, C), jnp.float32),
        "bproj": 0.05 * jax.random.normal(ks[4], (1, C), jnp.float32),
        "ln2_g": 1.0 + 0.1 * jax.random.normal(ks[5], (1, C), jnp.float32),
        "ln2_b": 0.1 * jax.random.normal(ks[6], (1, C), jnp.float32),
        "w1":    0.05 * jax.random.normal(ks[7], (C, hidden), jnp.float32),
        "b1":    0.05 * jax.random.normal(ks[8], (1, hidden), jnp.float32),
        "w2":    0.05 * jax.random.normal(ks[9], (hidden, C), jnp.float32),
        "b2":    0.05 * jax.random.normal(ks[10], (1, C), jnp.float32),
    }
    # (PyTorch inits the bias table to zeros; use small random values here so
    #  the relative-bias path is actually exercised.)
    rel_table = 0.1 * jax.random.normal(
        ks[11], ((2 * max_rel_distance - 1) ** 2, num_heads), jnp.float32)

    rel_index = build_relative_index(max_rel_distance)
    rel_bias = gather_relative_bias(rel_table, rel_index, N, num_heads)  # (H, N, N)

    x = jax.random.normal(jax.random.PRNGKey(42), (B, N, C), jnp.float32)

    kparams = prepare_params(params, num_heads)   # one-time host-side prep
    out = relative_transformer_block(x, kparams, rel_bias, num_heads)
    out = jax.block_until_ready(out)

    ref = jax.block_until_ready(reference(x, params, rel_bias, num_heads))
    assert out.shape == (B, N, C)
    # bf16 MXU operands + approx reciprocal -> tolerance loosened vs. the
    # exact-f32 reference.
    err = float(jnp.max(jnp.abs(out - ref)))
    assert err < 2e-2, f"max abs err {err}"

    print("KERNEL_OK")
</pallas_src>

<mosaic_0001>
module attributes {stable_mosaic.version = 11 : i64} {
  func.func @block_kernel(%arg0: i32, %arg1: memref<32x32xf32, #tpu.memory_space<vmem>>, %arg2: memref<1x32xf32, #tpu.memory_space<vmem>>, %arg3: memref<1x32xf32, #tpu.memory_space<vmem>>, %arg4: memref<32x32xbf16, #tpu.memory_space<vmem>>, %arg5: memref<32x32xbf16, #tpu.memory_space<vmem>>, %arg6: memref<32x32xbf16, #tpu.memory_space<vmem>>, %arg7: memref<4x8x32xbf16, #tpu.memory_space<vmem>>, %arg8: memref<1x32xf32, #tpu.memory_space<vmem>>, %arg9: memref<4x16x16xf32, #tpu.memory_space<vmem>>, %arg10: memref<1x32xf32, #tpu.memory_space<vmem>>, %arg11: memref<1x32xf32, #tpu.memory_space<vmem>>, %arg12: memref<32x128xbf16, #tpu.memory_space<vmem>>, %arg13: memref<1x128xf32, #tpu.memory_space<vmem>>, %arg14: memref<128x32xbf16, #tpu.memory_space<vmem>>, %arg15: memref<1x32xf32, #tpu.memory_space<vmem>>, %arg16: memref<32x32xf32, #tpu.memory_space<vmem>>) attributes {dimension_semantics = [#tpu.dimension_semantics<parallel>], iteration_bounds = array<i64: 1>, scalar_prefetch = 0 : i64, scratch_operands = 0 : i64, tpu.core_type = #tpu.core_type<tc>, window_params = [{transform_indices = @transform_0, window_bounds = array<i64: 32, 32>}, {pipeline_mode = #tpu.pipeline_mode<synchronous>, transform_indices = @transform_1, window_bounds = array<i64: 1, 32>}, {pipeline_mode = #tpu.pipeline_mode<synchronous>, transform_indices = @transform_2, window_bounds = array<i64: 1, 32>}, {pipeline_mode = #tpu.pipeline_mode<synchronous>, transform_indices = @transform_3, window_bounds = array<i64: 32, 32>}, {pipeline_mode = #tpu.pipeline_mode<synchronous>, transform_indices = @transform_4, window_bounds = array<i64: 32, 32>}, {pipeline_mode = #tpu.pipeline_mode<synchronous>, transform_indices = @transform_5, window_bounds = array<i64: 32, 32>}, {pipeline_mode = #tpu.pipeline_mode<synchronous>, transform_indices = @transform_6, window_bounds = array<i64: 4, 8, 32>}, {pipeline_mode = #tpu.pipeline_mode<synchronous>, transform_indices = @transform_7, window_bounds = array<i64: 1, 32>}, {pipeline_mode = #tpu.pipeline_mode<synchronous>, transform_indices = @transform_8, window_bounds = array<i64: 4, 16, 16>}, {pipeline_mode = #tpu.pipeline_mode<synchronous>, transform_indices = @transform_9, window_bounds = array<i64: 1, 32>}, {pipeline_mode = #tpu.pipeline_mode<synchronous>, transform_indices = @transform_10, window_bounds = array<i64: 1, 32>}, {pipeline_mode = #tpu.pipeline_mode<synchronous>, transform_indices = @transform_11, window_bounds = array<i64: 32, 128>}, {pipeline_mode = #tpu.pipeline_mode<synchronous>, transform_indices = @transform_12, window_bounds = array<i64: 1, 128>}, {pipeline_mode = #tpu.pipeline_mode<synchronous>, transform_indices = @transform_13, window_bounds = array<i64: 128, 32>}, {pipeline_mode = #tpu.pipeline_mode<synchronous>, transform_indices = @transform_14, window_bounds = array<i64: 1, 32>}, {transform_indices = @transform_15, window_bounds = array<i64: 32, 32>}]} {
    %c0 = arith.constant 0 : index
    %c0_0 = arith.constant 0 : index
    %0 = vector.load %arg1[%c0, %c0_0] : memref<32x32xf32, #tpu.memory_space<vmem>>, vector<32x32xf32>
    %c0_1 = arith.constant 0 : index
    %c0_2 = arith.constant 0 : index
    %1 = vector.load %arg2[%c0_1, %c0_2] : memref<1x32xf32, #tpu.memory_space<vmem>>, vector<1x32xf32>
    %2 = vector.shape_cast %1 : vector<1x32xf32> to vector<32xf32>
    %c0_3 = arith.constant 0 : index
    %c0_4 = arith.constant 0 : index
    %3 = vector.load %arg3[%c0_3, %c0_4] : memref<1x32xf32, #tpu.memory_space<vmem>>, vector<1x32xf32>
    %4 = vector.shape_cast %3 : vector<1x32xf32> to vector<32xf32>
    %cst = arith.constant dense<0.000000e+00> : vector<32xf32>
    %5 = vector.multi_reduction <add>, %0, %cst [1] : vector<32x32xf32> to vector<32xf32>
    %6 = vector.shape_cast %5 : vector<32xf32> to vector<32x1xf32>
    %cst_5 = arith.constant 3.200000e+01 : f32
    %7 = vector.broadcast %cst_5 : f32 to vector<32x1xf32>
    %8 = arith.divf %6, %7 : vector<32x1xf32>
    %9 = vector.broadcast %8 : vector<32x1xf32> to vector<32x32xf32>
    %10 = arith.subf %0, %9 : vector<32x32xf32>
    %11 = arith.mulf %10, %10 : vector<32x32xf32>
    %cst_6 = arith.constant dense<0.000000e+00> : vector<32xf32>
    %12 = vector.multi_reduction <add>, %11, %cst_6 [1] : vector<32x32xf32> to vector<32xf32>
    %13 = vector.shape_cast %12 : vector<32xf32> to vector<32x1xf32>
    %cst_7 = arith.constant 3.200000e+01 : f32
    %14 = vector.broadcast %cst_7 : f32 to vector<32x1xf32>
    %15 = arith.divf %13, %14 : vector<32x1xf32>
    %16 = vector.broadcast %8 : vector<32x1xf32> to vector<32x32xf32>
    %17 = arith.subf %0, %16 : vector<32x32xf32>
    %cst_8 = arith.constant 9.99999974E-6 : f32
    %18 = vector.broadcast %cst_8 : f32 to vector<32x1xf32>
    %19 = arith.addf %15, %18 : vector<32x1xf32>
    %20 = math.rsqrt %19 : vector<32x1xf32>
    %21 = vector.broadcast %20 : vector<32x1xf32> to vector<32x32xf32>
    %22 = arith.mulf %17, %21 : vector<32x32xf32>
    %23 = vector.shape_cast %2 : vector<32xf32> to vector<1x32xf32>
    %24 = vector.broadcast %23 : vector<1x32xf32> to vector<32x32xf32>
    %25 = arith.mulf %22, %24 : vector<32x32xf32>
    %26 = vector.shape_cast %4 : vector<32xf32> to vector<1x32xf32>
    %27 = vector.broadcast %26 : vector<1x32xf32> to vector<32x32xf32>
    %28 = arith.addf %25, %27 : vector<32x32xf32>
    %29 = arith.truncf %28 : vector<32x32xf32> to vector<32x32xbf16>
    %c0_9 = arith.constant 0 : index
    %c0_10 = arith.constant 0 : index
    %30 = vector.load %arg4[%c0_9, %c0_10] : memref<32x32xbf16, #tpu.memory_space<vmem>>, vector<32x32xbf16>
    %cst_11 = arith.constant dense<0.000000e+00> : vector<32x32xf32>
    %31 = tpu.matmul %29, %30, %cst_11 {dimension_numbers = #tpu.dot_dimension_numbers<[1], [0], [0], [1], [0, 0, 1, 1], [], []>} : vector<32x32xbf16>, vector<32x32xbf16>, vector<32x32xf32> -> vector<32x32xf32>
    %c0_12 = arith.constant 0 : index
    %c0_13 = arith.constant 0 : index
    %32 = vector.load %arg5[%c0_12, %c0_13] : memref<32x32xbf16, #tpu.memory_space<vmem>>, vector<32x32xbf16>
    %cst_14 = arith.constant dense<0.000000e+00> : vector<32x32xf32>
    %33 = tpu.matmul %29, %32, %cst_14 {dimension_numbers = #tpu.dot_dimension_numbers<[1], [0], [0], [1], [0, 0, 1, 1], [], []>} : vector<32x32xbf16>, vector<32x32xbf16>, vector<32x32xf32> -> vector<32x32xf32>
    %c0_15 = arith.constant 0 : index
    %c0_16 = arith.constant 0 : index
    %34 = vector.load %arg6[%c0_15, %c0_16] : memref<32x32xbf16, #tpu.memory_space<vmem>>, vector<32x32xbf16>
    %cst_17 = arith.constant dense<0.000000e+00> : vector<32x32xf32>
    %35 = tpu.matmul %29, %34, %cst_17 {dimension_numbers = #tpu.dot_dimension_numbers<[1], [0], [0], [1], [0, 0, 1, 1], [], []>} : vector<32x32xbf16>, vector<32x32xbf16>, vector<32x32xf32> -> vector<32x32xf32>
    %36 = arith.truncf %31 : vector<32x32xf32> to vector<32x32xbf16>
    %37 = vector.shape_cast %36 : vector<32x32xbf16> to vector<2x16x32xbf16>
    %38 = arith.truncf %33 : vector<32x32xf32> to vector<32x32xbf16>
    %39 = vector.shape_cast %38 : vector<32x32xbf16> to vector<2x16x32xbf16>
    %40 = arith.truncf %35 : vector<32x32xf32> to vector<32x32xbf16>
    %41 = vector.shape_cast %40 : vector<32x32xbf16> to vector<2x16x32xbf16>
    %cst_18 = arith.constant 0.000000e+00 : f32
    %42 = vector.broadcast %cst_18 : f32 to vector<32x32xf32>
    %43 = vector.extract_strided_slice %37 {offsets = [0, 0, 0], sizes = [2, 16, 8], strides = [1, 1, 1]} : vector<2x16x32xbf16> to vector<2x16x8xbf16>
    %44 = vector.extract_strided_slice %39 {offsets = [0, 0, 0], sizes = [2, 16, 8], strides = [1, 1, 1]} : vector<2x16x32xbf16> to vector<2x16x8xbf16>
    %45 = vector.extract_strided_slice %41 {offsets = [0, 0, 0], sizes = [2, 16, 8], strides = [1, 1, 1]} : vector<2x16x32xbf16> to vector<2x16x8xbf16>
    "tpu.trace_start"() <{level = 10 : i32, message = "bnd,bmd->bnm"}> : () -> ()
    %cst_19 = arith.constant dense<0.000000e+00> : vector<2x16x16xf32>
    %46 = tpu.matmul %43, %44, %cst_19 {dimension_numbers = #tpu.dot_dimension_numbers<[2], [2], [1], [1], [0, 0, 0, 1, 1, 1], [0], [0]>} : vector<2x16x8xbf16>, vector<2x16x8xbf16>, vector<2x16x16xf32> -> vector<2x16x16xf32>
    "tpu.trace_stop"() : () -> ()
    %c0_20 = arith.constant 0 : index
    %c0_21 = arith.constant 0 : index
    %c0_22 = arith.constant 0 : index
    %47 = vector.load %arg9[%c0_20, %c0_21, %c0_22] : memref<4x16x16xf32, #tpu.memory_space<vmem>>, vector<1x16x16xf32>
    %48 = vector.shape_cast %47 : vector<1x16x16xf32> to vector<16x16xf32>
    %49 = vector.shape_cast %48 : vector<16x16xf32> to vector<1x16x16xf32>
    %50 = vector.broadcast %49 : vector<1x16x16xf32> to vector<2x16x16xf32>
    %51 = arith.addf %46, %50 : vector<2x16x16xf32>
    %cst_23 = arith.constant dense<0xFF800000> : vector<2x16xf32>
    %52 = vector.multi_reduction <maximumf>, %51, %cst_23 [2] : vector<2x16x16xf32> to vector<2x16xf32>
    %53 = vector.shape_cast %52 : vector<2x16xf32> to vector<2x16x1xf32>
    %54 = vector.broadcast %53 : vector<2x16x1xf32> to vector<2x16x16xf32>
    %55 = arith.subf %51, %54 : vector<2x16x16xf32>
    %56 = math.exp %55 : vector<2x16x16xf32>
    %cst_24 = arith.constant dense<0.000000e+00> : vector<2x16xf32>
    %57 = vector.multi_reduction <add>, %56, %cst_24 [2] : vector<2x16x16xf32> to vector<2x16xf32>
    %58 = vector.shape_cast %57 : vector<2x16xf32> to vector<2x16x1xf32>
    %59 = tpu.reciprocal %58 {approx = true} : vector<2x16x1xf32> -> vector<2x16x1xf32>
    %60 = vector.broadcast %59 : vector<2x16x1xf32> to vector<2x16x16xf32>
    %61 = arith.mulf %56, %60 : vector<2x16x16xf32>
    %62 = arith.truncf %61 : vector<2x16x16xf32> to vector<2x16x16xbf16>
    "tpu.trace_start"() <{level = 10 : i32, message = "bnm,bmd->bnd"}> : () -> ()
    %cst_25 = arith.constant dense<0.000000e+00> : vector<2x16x8xf32>
    %63 = tpu.matmul %62, %45, %cst_25 {dimension_numbers = #tpu.dot_dimension_numbers<[2], [1], [1], [2], [0, 0, 0, 1, 1, 2], [0], [0]>} : vector<2x16x16xbf16>, vector<2x16x8xbf16>, vector<2x16x8xf32> -> vector<2x16x8xf32>
    "tpu.trace_stop"() : () -> ()
    %64 = vector.shape_cast %63 : vector<2x16x8xf32> to vector<32x8xf32>
    %65 = arith.truncf %64 : vector<32x8xf32> to vector<32x8xbf16>
    %c0_26 = arith.constant 0 : index
    %c0_27 = arith.constant 0 : index
    %c0_28 = arith.constant 0 : index
    %66 = vector.load %arg7[%c0_26, %c0_27, %c0_28] : memref<4x8x32xbf16, #tpu.memory_space<vmem>>, vector<1x8x32xbf16>
    %67 = vector.shape_cast %66 : vector<1x8x32xbf16> to vector<8x32xbf16>
    %cst_29 = arith.constant dense<0.000000e+00> : vector<32x32xf32>
    %68 = tpu.matmul %65, %67, %cst_29 {dimension_numbers = #tpu.dot_dimension_numbers<[1], [0], [0], [1], [0, 0, 1, 1], [], []>} : vector<32x8xbf16>, vector<8x32xbf16>, vector<32x32xf32> -> vector<32x32xf32>
    %69 = arith.addf %42, %68 : vector<32x32xf32>
    %70 = vector.extract_strided_slice %37 {offsets = [0, 0, 8], sizes = [2, 16, 8], strides = [1, 1, 1]} : vector<2x16x32xbf16> to vector<2x16x8xbf16>
    %71 = vector.extract_strided_slice %39 {offsets = [0, 0, 8], sizes = [2, 16, 8], strides = [1, 1, 1]} : vector<2x16x32xbf16> to vector<2x16x8xbf16>
    %72 = vector.extract_strided_slice %41 {offsets = [0, 0, 8], sizes = [2, 16, 8], strides = [1, 1, 1]} : vector<2x16x32xbf16> to vector<2x16x8xbf16>
    "tpu.trace_start"() <{level = 10 : i32, message = "bnd,bmd->bnm"}> : () -> ()
    %cst_30 = arith.constant dense<0.000000e+00> : vector<2x16x16xf32>
    %73 = tpu.matmul %70, %71, %cst_30 {dimension_numbers = #tpu.dot_dimension_numbers<[2], [2], [1], [1], [0, 0, 0, 1, 1, 1], [0], [0]>} : vector<2x16x8xbf16>, vector<2x16x8xbf16>, vector<2x16x16xf32> -> vector<2x16x16xf32>
    "tpu.trace_stop"() : () -> ()
    %c1 = arith.constant 1 : index
    %c0_31 = arith.constant 0 : index
    %c0_32 = arith.constant 0 : index
    %74 = vector.load %arg9[%c1, %c0_31, %c0_32] : memref<4x16x16xf32, #tpu.memory_space<vmem>>, vector<1x16x16xf32>
    %75 = vector.shape_cast %74 : vector<1x16x16xf32> to vector<16x16xf32>
    %76 = vector.shape_cast %75 : vector<16x16xf32> to vector<1x16x16xf32>
    %77 = vector.broadcast %76 : vector<1x16x16xf32> to vector<2x16x16xf32>
    %78 = arith.addf %73, %77 : vector<2x16x16xf32>
    %cst_33 = arith.constant dense<0xFF800000> : vector<2x16xf32>
    %79 = vector.multi_reduction <maximumf>, %78, %cst_33 [2] : vector<2x16x16xf32> to vector<2x16xf32>
    %80 = vector.shape_cast %79 : vector<2x16xf32> to vector<2x16x1xf32>
    %81 = vector.broadcast %80 : vector<2x16x1xf32> to vector<2x16x16xf32>
    %82 = arith.subf %78, %81 : vector<2x16x16xf32>
    %83 = math.exp %82 : vector<2x16x16xf32>
    %cst_34 = arith.constant dense<0.000000e+00> : vector<2x16xf32>
    %84 = vector.multi_reduction <add>, %83, %cst_34 [2] : vector<2x16x16xf32> to vector<2x16xf32>
    %85 = vector.shape_cast %84 : vector<2x16xf32> to vector<2x16x1xf32>
    %86 = tpu.reciprocal %85 {approx = true} : vector<2x16x1xf32> -> vector<2x16x1xf32>
    %87 = vector.broadcast %86 : vector<2x16x1xf32> to vector<2x16x16xf32>
    %88 = arith.mulf %83, %87 : vector<2x16x16xf32>
    %89 = arith.truncf %88 : vector<2x16x16xf32> to vector<2x16x16xbf16>
    "tpu.trace_start"() <{level = 10 : i32, message = "bnm,bmd->bnd"}> : () -> ()
    %cst_35 = arith.constant dense<0.000000e+00> : vector<2x16x8xf32>
    %90 = tpu.matmul %89, %72, %cst_35 {dimension_numbers = #tpu.dot_dimension_numbers<[2], [1], [1], [2], [0, 0, 0, 1, 1, 2], [0], [0]>} : vector<2x16x16xbf16>, vector<2x16x8xbf16>, vector<2x16x8xf32> -> vector<2x16x8xf32>
    "tpu.trace_stop"() : () -> ()
    %91 = vector.shape_cast %90 : vector<2x16x8xf32> to vector<32x8xf32>
    %92 = arith.truncf %91 : vector<32x8xf32> to vector<32x8xbf16>
    %c1_36 = arith.constant 1 : index
    %c0_37 = arith.constant 0 : index
    %c0_38 = arith.constant 0 : index
    %93 = vector.load %arg7[%c1_36, %c0_37, %c0_38] : memref<4x8x32xbf16, #tpu.memory_space<vmem>>, vector<1x8x32xbf16>
    %94 = vector.shape_cast %93 : vector<1x8x32xbf16> to vector<8x32xbf16>
    %cst_39 = arith.constant dense<0.000000e+00> : vector<32x32xf32>
    %95 = tpu.matmul %92, %94, %cst_39 {dimension_numbers = #tpu.dot_dimension_numbers<[1], [0], [0], [1], [0, 0, 1, 1], [], []>} : vector<32x8xbf16>, vector<8x32xbf16>, vector<32x32xf32> -> vector<32x32xf32>
    %96 = arith.addf %69, %95 : vector<32x32xf32>
    %97 = vector.extract_strided_slice %37 {offsets = [0, 0, 16], sizes = [2, 16, 8], strides = [1, 1, 1]} : vector<2x16x32xbf16> to vector<2x16x8xbf16>
    %98 = vector.extract_strided_slice %39 {offsets = [0, 0, 16], sizes = [2, 16, 8], strides = [1, 1, 1]} : vector<2x16x32xbf16> to vector<2x16x8xbf16>
    %99 = vector.extract_strided_slice %41 {offsets = [0, 0, 16], sizes = [2, 16, 8], strides = [1, 1, 1]} : vector<2x16x32xbf16> to vector<2x16x8xbf16>
    "tpu.trace_start"() <{level = 10 : i32, message = "bnd,bmd->bnm"}> : () -> ()
    %cst_40 = arith.constant dense<0.000000e+00> : vector<2x16x16xf32>
    %100 = tpu.matmul %97, %98, %cst_40 {dimension_numbers = #tpu.dot_dimension_numbers<[2], [2], [1], [1], [0, 0, 0, 1, 1, 1], [0], [0]>} : vector<2x16x8xbf16>, vector<2x16x8xbf16>, vector<2x16x16xf32> -> vector<2x16x16xf32>
    "tpu.trace_stop"() : () -> ()
    %c2 = arith.constant 2 : index
    %c0_41 = arith.constant 0 : index
    %c0_42 = arith.constant 0 : index
    %101 = vector.load %arg9[%c2, %c0_41, %c0_42] : memref<4x16x16xf32, #tpu.memory_space<vmem>>, vector<1x16x16xf32>
    %102 = vector.shape_cast %101 : vector<1x16x16xf32> to vector<16x16xf32>
    %103 = vector.shape_cast %102 : vector<16x16xf32> to vector<1x16x16xf32>
    %104 = vector.broadcast %103 : vector<1x16x16xf32> to vector<2x16x16xf32>
    %105 = arith.addf %100, %104 : vector<2x16x16xf32>
    %cst_43 = arith.constant dense<0xFF800000> : vector<2x16xf32>
    %106 = vector.multi_reduction <maximumf>, %105, %cst_43 [2] : vector<2x16x16xf32> to vector<2x16xf32>
    %107 = vector.shape_cast %106 : vector<2x16xf32> to vector<2x16x1xf32>
    %108 = vector.broadcast %107 : vector<2x16x1xf32> to vector<2x16x16xf32>
    %109 = arith.subf %105, %108 : vector<2x16x16xf32>
    %110 = math.exp %109 : vector<2x16x16xf32>
    %cst_44 = arith.constant dense<0.000000e+00> : vector<2x16xf32>
    %111 = vector.multi_reduction <add>, %110, %cst_44 [2] : vector<2x16x16xf32> to vector<2x16xf32>
    %112 = vector.shape_cast %111 : vector<2x16xf32> to vector<2x16x1xf32>
    %113 = tpu.reciprocal %112 {approx = true} : vector<2x16x1xf32> -> vector<2x16x1xf32>
    %114 = vector.broadcast %113 : vector<2x16x1xf32> to vector<2x16x16xf32>
    %115 = arith.mulf %110, %114 : vector<2x16x16xf32>
    %116 = arith.truncf %115 : vector<2x16x16xf32> to vector<2x16x16xbf16>
    "tpu.trace_start"() <{level = 10 : i32, message = "bnm,bmd->bnd"}> : () -> ()
    %cst_45 = arith.constant dense<0.000000e+00> : vector<2x16x8xf32>
    %117 = tpu.matmul %116, %99, %cst_45 {dimension_numbers = #tpu.dot_dimension_numbers<[2], [1], [1], [2], [0, 0, 0, 1, 1, 2], [0], [0]>} : vector<2x16x16xbf16>, vector<2x16x8xbf16>, vector<2x16x8xf32> -> vector<2x16x8xf32>
    "tpu.trace_stop"() : () -> ()
    %118 = vector.shape_cast %117 : vector<2x16x8xf32> to vector<32x8xf32>
    %119 = arith.truncf %118 : vector<32x8xf32> to vector<32x8xbf16>
    %c2_46 = arith.constant 2 : index
    %c0_47 = arith.constant 0 : index
    %c0_48 = arith.constant 0 : index
    %120 = vector.load %arg7[%c2_46, %c0_47, %c0_48] : memref<4x8x32xbf16, #tpu.memory_space<vmem>>, vector<1x8x32xbf16>
    %121 = vector.shape_cast %120 : vector<1x8x32xbf16> to vector<8x32xbf16>
    %cst_49 = arith.constant dense<0.000000e+00> : vector<32x32xf32>
    %122 = tpu.matmul %119, %121, %cst_49 {dimension_numbers = #tpu.dot_dimension_numbers<[1], [0], [0], [1], [0, 0, 1, 1], [], []>} : vector<32x8xbf16>, vector<8x32xbf16>, vector<32x32xf32> -> vector<32x32xf32>
    %123 = arith.addf %96, %122 : vector<32x32xf32>
    %124 = vector.extract_strided_slice %37 {offsets = [0, 0, 24], sizes = [2, 16, 8], strides = [1, 1, 1]} : vector<2x16x32xbf16> to vector<2x16x8xbf16>
    %125 = vector.extract_strided_slice %39 {offsets = [0, 0, 24], sizes = [2, 16, 8], strides = [1, 1, 1]} : vector<2x16x32xbf16> to vector<2x16x8xbf16>
    %126 = vector.extract_strided_slice %41 {offsets = [0, 0, 24], sizes = [2, 16, 8], strides = [1, 1, 1]} : vector<2x16x32xbf16> to vector<2x16x8xbf16>
    "tpu.trace_start"() <{level = 10 : i32, message = "bnd,bmd->bnm"}> : () -> ()
    %cst_50 = arith.constant dense<0.000000e+00> : vector<2x16x16xf32>
    %127 = tpu.matmul %124, %125, %cst_50 {dimension_numbers = #tpu.dot_dimension_numbers<[2], [2], [1], [1], [0, 0, 0, 1, 1, 1], [0], [0]>} : vector<2x16x8xbf16>, vector<2x16x8xbf16>, vector<2x16x16xf32> -> vector<2x16x16xf32>
    "tpu.trace_stop"() : () -> ()
    %c3 = arith.constant 3 : index
    %c0_51 = arith.constant 0 : index
    %c0_52 = arith.constant 0 : index
    %128 = vector.load %arg9[%c3, %c0_51, %c0_52] : memref<4x16x16xf32, #tpu.memory_space<vmem>>, vector<1x16x16xf32>
    %129 = vector.shape_cast %128 : vector<1x16x16xf32> to vector<16x16xf32>
    %130 = vector.shape_cast %129 : vector<16x16xf32> to vector<1x16x16xf32>
    %131 = vector.broadcast %130 : vector<1x16x16xf32> to vector<2x16x16xf32>
    %132 = arith.addf %127, %131 : vector<2x16x16xf32>
    %cst_53 = arith.constant dense<0xFF800000> : vector<2x16xf32>
    %133 = vector.multi_reduction <maximumf>, %132, %cst_53 [2] : vector<2x16x16xf32> to vector<2x16xf32>
    %134 = vector.shape_cast %133 : vector<2x16xf32> to vector<2x16x1xf32>
    %135 = vector.broadcast %134 : vector<2x16x1xf32> to vector<2x16x16xf32>
    %136 = arith.subf %132, %135 : vector<2x16x16xf32>
    %137 = math.exp %136 : vector<2x16x16xf32>
    %cst_54 = arith.constant dense<0.000000e+00> : vector<2x16xf32>
    %138 = vector.multi_reduction <add>, %137, %cst_54 [2] : vector<2x16x16xf32> to vector<2x16xf32>
    %139 = vector.shape_cast %138 : vector<2x16xf32> to vector<2x16x1xf32>
    %140 = tpu.reciprocal %139 {approx = true} : vector<2x16x1xf32> -> vector<2x16x1xf32>
    %141 = vector.broadcast %140 : vector<2x16x1xf32> to vector<2x16x16xf32>
    %142 = arith.mulf %137, %141 : vector<2x16x16xf32>
    %143 = arith.truncf %142 : vector<2x16x16xf32> to vector<2x16x16xbf16>
    "tpu.trace_start"() <{level = 10 : i32, message = "bnm,bmd->bnd"}> : () -> ()
    %cst_55 = arith.constant dense<0.000000e+00> : vector<2x16x8xf32>
    %144 = tpu.matmul %143, %126, %cst_55 {dimension_numbers = #tpu.dot_dimension_numbers<[2], [1], [1], [2], [0, 0, 0, 1, 1, 2], [0], [0]>} : vector<2x16x16xbf16>, vector<2x16x8xbf16>, vector<2x16x8xf32> -> vector<2x16x8xf32>
    "tpu.trace_stop"() : () -> ()
    %145 = vector.shape_cast %144 : vector<2x16x8xf32> to vector<32x8xf32>
    %146 = arith.truncf %145 : vector<32x8xf32> to vector<32x8xbf16>
    %c3_56 = arith.constant 3 : index
    %c0_57 = arith.constant 0 : index
    %c0_58 = arith.constant 0 : index
    %147 = vector.load %arg7[%c3_56, %c0_57, %c0_58] : memref<4x8x32xbf16, #tpu.memory_space<vmem>>, vector<1x8x32xbf16>
    %148 = vector.shape_cast %147 : vector<1x8x32xbf16> to vector<8x32xbf16>
    %cst_59 = arith.constant dense<0.000000e+00> : vector<32x32xf32>
    %149 = tpu.matmul %146, %148, %cst_59 {dimension_numbers = #tpu.dot_dimension_numbers<[1], [0], [0], [1], [0, 0, 1, 1], [], []>} : vector<32x8xbf16>, vector<8x32xbf16>, vector<32x32xf32> -> vector<32x32xf32>
    %150 = arith.addf %123, %149 : vector<32x32xf32>
    %151 = arith.addf %0, %150 : vector<32x32xf32>
    %c0_60 = arith.constant 0 : index
    %c0_61 = arith.constant 0 : index
    %152 = vector.load %arg8[%c0_60, %c0_61] : memref<1x32xf32, #tpu.memory_space<vmem>>, vector<1x32xf32>
    %153 = vector.shape_cast %152 : vector<1x32xf32> to vector<32xf32>
    %154 = vector.shape_cast %153 : vector<32xf32> to vector<1x32xf32>
    %155 = vector.broadcast %154 : vector<1x32xf32> to vector<32x32xf32>
    %156 = arith.addf %151, %155 : vector<32x32xf32>
    %c0_62 = arith.constant 0 : index
    %c0_63 = arith.constant 0 : index
    %157 = vector.load %arg10[%c0_62, %c0_63] : memref<1x32xf32, #tpu.memory_space<vmem>>, vector<1x32xf32>
    %158 = vector.shape_cast %157 : vector<1x32xf32> to vector<32xf32>
    %c0_64 = arith.constant 0 : index
    %c0_65 = arith.constant 0 : index
    %159 = vector.load %arg11[%c0_64, %c0_65] : memref<1x32xf32, #tpu.memory_space<vmem>>, vector<1x32xf32>
    %160 = vector.shape_cast %159 : vector<1x32xf32> to vector<32xf32>
    %cst_66 = arith.constant dense<0.000000e+00> : vector<32xf32>
    %161 = vector.multi_reduction <add>, %156, %cst_66 [1] : vector<32x32xf32> to vector<32xf32>
    %162 = vector.shape_cast %161 : vector<32xf32> to vector<32x1xf32>
    %cst_67 = arith.constant 3.200000e+01 : f32
    %163 = vector.broadcast %cst_67 : f32 to vector<32x1xf32>
    %164 = arith.divf %162, %163 : vector<32x1xf32>
    %165 = vector.broadcast %164 : vector<32x1xf32> to vector<32x32xf32>
    %166 = arith.subf %156, %165 : vector<32x32xf32>
    %167 = arith.mulf %166, %166 : vector<32x32xf32>
    %cst_68 = arith.constant dense<0.000000e+00> : vector<32xf32>
    %168 = vector.multi_reduction <add>, %167, %cst_68 [1] : vector<32x32xf32> to vector<32xf32>
    %169 = vector.shape_cast %168 : vector<32xf32> to vector<32x1xf32>
    %cst_69 = arith.constant 3.200000e+01 : f32
    %170 = vector.broadcast %cst_69 : f32 to vector<32x1xf32>
    %171 = arith.divf %169, %170 : vector<32x1xf32>
    %172 = vector.broadcast %164 : vector<32x1xf32> to vector<32x32xf32>
    %173 = arith.subf %156, %172 : vector<32x32xf32>
    %cst_70 = arith.constant 9.99999974E-6 : f32
    %174 = vector.broadcast %cst_70 : f32 to vector<32x1xf32>
    %175 = arith.addf %171, %174 : vector<32x1xf32>
    %176 = math.rsqrt %175 : vector<32x1xf32>
    %177 = vector.broadcast %176 : vector<32x1xf32> to vector<32x32xf32>
    %178 = arith.mulf %173, %177 : vector<32x32xf32>
    %179 = vector.shape_cast %158 : vector<32xf32> to vector<1x32xf32>
    %180 = vector.broadcast %179 : vector<1x32xf32> to vector<32x32xf32>
    %181 = arith.mulf %178, %180 : vector<32x32xf32>
    %182 = vector.shape_cast %160 : vector<32xf32> to vector<1x32xf32>
    %183 = vector.broadcast %182 : vector<1x32xf32> to vector<32x32xf32>
    %184 = arith.addf %181, %183 : vector<32x32xf32>
    %185 = arith.truncf %184 : vector<32x32xf32> to vector<32x32xbf16>
    %c0_71 = arith.constant 0 : index
    %c0_72 = arith.constant 0 : index
    %186 = vector.load %arg12[%c0_71, %c0_72] : memref<32x128xbf16, #tpu.memory_space<vmem>>, vector<32x128xbf16>
    %cst_73 = arith.constant dense<0.000000e+00> : vector<32x128xf32>
    %187 = tpu.matmul %185, %186, %cst_73 {dimension_numbers = #tpu.dot_dimension_numbers<[1], [0], [0], [1], [0, 0, 1, 1], [], []>} : vector<32x32xbf16>, vector<32x128xbf16>, vector<32x128xf32> -> vector<32x128xf32>
    %c0_74 = arith.constant 0 : index
    %c0_75 = arith.constant 0 : index
    %188 = vector.load %arg13[%c0_74, %c0_75] : memref<1x128xf32, #tpu.memory_space<vmem>>, vector<1x128xf32>
    %189 = vector.shape_cast %188 : vector<1x128xf32> to vector<128xf32>
    %190 = vector.shape_cast %189 : vector<128xf32> to vector<1x128xf32>
    %191 = vector.broadcast %190 : vector<1x128xf32> to vector<32x128xf32>
    %192 = arith.addf %187, %191 : vector<32x128xf32>
    %cst_76 = arith.constant 5.000000e-01 : f32
    %193 = vector.broadcast %cst_76 : f32 to vector<32x128xf32>
    %194 = arith.mulf %193, %192 : vector<32x128xf32>
    %cst_77 = arith.constant 0.707106769 : f32
    %195 = vector.broadcast %cst_77 : f32 to vector<32x128xf32>
    %196 = arith.mulf %192, %195 : vector<32x128xf32>
    %cst_78 = arith.constant 0.000000e+00 : f32
    %197 = vector.broadcast %cst_78 : f32 to vector<32x128xf32>
    %198 = arith.cmpf oge, %196, %197 : vector<32x128xf32>
    %cst_79 = arith.constant 1.000000e+00 : f32
    %cst_80 = arith.constant -1.000000e+00 : f32
    %199 = vector.broadcast %cst_79 : f32 to vector<32x128xf32>
    %200 = vector.broadcast %cst_80 : f32 to vector<32x128xf32>
    %201 = arith.select %198, %199, %200 : vector<32x128xi1>, vector<32x128xf32>
    %202 = math.absf %196 : vector<32x128xf32>
    %cst_81 = arith.constant 0.327591091 : f32
    %203 = vector.broadcast %cst_81 : f32 to vector<32x128xf32>
    %204 = arith.mulf %203, %202 : vector<32x128xf32>
    %cst_82 = arith.constant 1.000000e+00 : f32
    %205 = vector.broadcast %cst_82 : f32 to vector<32x128xf32>
    %206 = arith.addf %205, %204 : vector<32x128xf32>
    %207 = tpu.reciprocal %206 : vector<32x128xf32> -> vector<32x128xf32>
    %cst_83 = arith.constant 1.06140542 : f32
    %208 = vector.broadcast %cst_83 : f32 to vector<32x128xf32>
    %209 = arith.mulf %208, %207 : vector<32x128xf32>
    %cst_84 = arith.constant -1.45315206 : f32
    %210 = vector.broadcast %cst_84 : f32 to vector<32x128xf32>
    %211 = arith.addf %209, %210 : vector<32x128xf32>
    %212 = arith.mulf %211, %207 : vector<32x128xf32>
    %cst_85 = arith.constant 1.42141378 : f32
    %213 = vector.broadcast %cst_85 : f32 to vector<32x128xf32>
    %214 = arith.addf %212, %213 : vector<32x128xf32>
    %215 = arith.mulf %214, %207 : vector<32x128xf32>
    %cst_86 = arith.constant -0.284496725 : f32
    %216 = vector.broadcast %cst_86 : f32 to vector<32x128xf32>
    %217 = arith.addf %215, %216 : vector<32x128xf32>
    %218 = arith.mulf %217, %207 : vector<32x128xf32>
    %cst_87 = arith.constant 0.254829586 : f32
    %219 = vector.broadcast %cst_87 : f32 to vector<32x128xf32>
    %220 = arith.addf %218, %219 : vector<32x128xf32>
    %221 = arith.mulf %220, %207 : vector<32x128xf32>
    %cst_88 = arith.constant 0.000000e+00 : f32
    %222 = vector.broadcast %cst_88 : f32 to vector<32x128xf32>
    %223 = arith.subf %222, %202 : vector<32x128xf32>
    %224 = arith.mulf %223, %202 : vector<32x128xf32>
    %225 = math.exp %224 : vector<32x128xf32>
    %226 = arith.mulf %221, %225 : vector<32x128xf32>
    %cst_89 = arith.constant 1.000000e+00 : f32
    %227 = vector.broadcast %cst_89 : f32 to vector<32x128xf32>
    %228 = arith.subf %227, %226 : vector<32x128xf32>
    %229 = arith.mulf %201, %228 : vector<32x128xf32>
    %cst_90 = arith.constant 1.000000e+00 : f32
    %230 = vector.broadcast %cst_90 : f32 to vector<32x128xf32>
    %231 = arith.addf %230, %229 : vector<32x128xf32>
    %232 = arith.mulf %194, %231 : vector<32x128xf32>
    %233 = arith.truncf %232 : vector<32x128xf32> to vector<32x128xbf16>
    %c0_91 = arith.constant 0 : index
    %c0_92 = arith.constant 0 : index
    %234 = vector.load %arg14[%c0_91, %c0_92] : memref<128x32xbf16, #tpu.memory_space<vmem>>, vector<128x32xbf16>
    %cst_93 = arith.constant dense<0.000000e+00> : vector<32x32xf32>
    %235 = tpu.matmul %233, %234, %cst_93 {dimension_numbers = #tpu.dot_dimension_numbers<[1], [0], [0], [1], [0, 0, 1, 1], [], []>} : vector<32x128xbf16>, vector<128x32xbf16>, vector<32x32xf32> -> vector<32x32xf32>
    %c0_94 = arith.constant 0 : index
    %c0_95 = arith.constant 0 : index
    %236 = vector.load %arg15[%c0_94, %c0_95] : memref<1x32xf32, #tpu.memory_space<vmem>>, vector<1x32xf32>
    %237 = vector.shape_cast %236 : vector<1x32xf32> to vector<32xf32>
    %238 = vector.shape_cast %237 : vector<32xf32> to vector<1x32xf32>
    %239 = vector.broadcast %238 : vector<1x32xf32> to vector<32x32xf32>
    %240 = arith.addf %235, %239 : vector<32x32xf32>
    %241 = arith.addf %156, %240 : vector<32x32xf32>
    %c0_96 = arith.constant 0 : index
    %c0_97 = arith.constant 0 : index
    %242 = vector.load %arg16[%c0_96, %c0_97] : memref<32x32xf32, #tpu.memory_space<vmem>>, vector<32x32xf32>
    tpu.vector_store %arg16[%c0_96, %c0_97], %241 {strides = array<i32>} : memref<32x32xf32, #tpu.memory_space<vmem>>, vector<32x32xf32>,
    return
  }
  func.func @transform_0(%arg0: i32) -> (i32, i32) {
    %c0_i32 = arith.constant 0 : i32
    %c0_i32_0 = arith.constant 0 : i32
    return %arg0, %c0_i32 : i32, i32
  }
  func.func @transform_1(%arg0: i32) -> (i32, i32) {
    %c0_i32 = arith.constant 0 : i32
    %c0_i32_0 = arith.constant 0 : i32
    %c0_i32_1 = arith.constant 0 : i32
    return %c0_i32, %c0_i32_0 : i32, i32
  }
  func.func @transform_2(%arg0: i32) -> (i32, i32) {
    %c0_i32 = arith.constant 0 : i32
    %c0_i32_0 = arith.constant 0 : i32
    %c0_i32_1 = arith.constant 0 : i32
    return %c0_i32, %c0_i32_0 : i32, i32
  }
  func.func @transform_3(%arg0: i32) -> (i32, i32) {
    %c0_i32 = arith.constant 0 : i32
    %c0_i32_0 = arith.constant 0 : i32
    %c0_i32_1 = arith.constant 0 : i32
    return %c0_i32, %c0_i32_0 : i32, i32
  }
  func.func @transform_4(%arg0: i32) -> (i32, i32) {
    %c0_i32 = arith.constant 0 : i32
    %c0_i32_0 = arith.constant 0 : i32
    %c0_i32_1 = arith.constant 0 : i32
    return %c0_i32, %c0_i32_0 : i32, i32
  }
  func.func @transform_5(%arg0: i32) -> (i32, i32) {
    %c0_i32 = arith.constant 0 : i32
    %c0_i32_0 = arith.constant 0 : i32
    %c0_i32_1 = arith.constant 0 : i32
    return %c0_i32, %c0_i32_0 : i32, i32
  }
  func.func @transform_6(%arg0: i32) -> (i32, i32, i32) {
    %c0_i32 = arith.constant 0 : i32
    %c0_i32_0 = arith.constant 0 : i32
    %c0_i32_1 = arith.constant 0 : i32
    %c0_i32_2 = arith.constant 0 : i32
    return %c0_i32, %c0_i32_0, %c0_i32_1 : i32, i32, i32
  }
  func.func @transform_7(%arg0: i32) -> (i32, i32) {
    %c0_i32 = arith.constant 0 : i32
    %c0_i32_0 = arith.constant 0 : i32
    %c0_i32_1 = arith.constant 0 : i32
    return %c0_i32, %c0_i32_0 : i32, i32
  }
  func.func @transform_8(%arg0: i32) -> (i32, i32, i32) {
    %c0_i32 = arith.constant 0 : i32
    %c0_i32_0 = arith.constant 0 : i32
    %c0_i32_1 = arith.constant 0 : i32
    %c0_i32_2 = arith.constant 0 : i32
    return %c0_i32, %c0_i32_0, %c0_i32_1 : i32, i32, i32
  }
  func.func @transform_9(%arg0: i32) -> (i32, i32) {
    %c0_i32 = arith.constant 0 : i32
    %c0_i32_0 = arith.constant 0 : i32
    %c0_i32_1 = arith.constant 0 : i32
    return %c0_i32, %c0_i32_0 : i32, i32
  }
  func.func @transform_10(%arg0: i32) -> (i32, i32) {
    %c0_i32 = arith.constant 0 : i32
    %c0_i32_0 = arith.constant 0 : i32
    %c0_i32_1 = arith.constant 0 : i32
    return %c0_i32, %c0_i32_0 : i32, i32
  }
  func.func @transform_11(%arg0: i32) -> (i32, i32) {
    %c0_i32 = arith.constant 0 : i32
    %c0_i32_0 = arith.constant 0 : i32
    %c0_i32_1 = arith.constant 0 : i32
    return %c0_i32, %c0_i32_0 : i32, i32
  }
  func.func @transform_12(%arg0: i32) -> (i32, i32) {
    %c0_i32 = arith.constant 0 : i32
    %c0_i32_0 = arith.constant 0 : i32
    %c0_i32_1 = arith.constant 0 : i32
    return %c0_i32, %c0_i32_0 : i32, i32
  }
  func.func @transform_13(%arg0: i32) -> (i32, i32) {
    %c0_i32 = arith.constant 0 : i32
    %c0_i32_0 = arith.constant 0 : i32
    %c0_i32_1 = arith.constant 0 : i32
    return %c0_i32, %c0_i32_0 : i32, i32
  }
  func.func @transform_14(%arg0: i32) -> (i32, i32) {
    %c0_i32 = arith.constant 0 : i32
    %c0_i32_0 = arith.constant 0 : i32
    %c0_i32_1 = arith.constant 0 : i32
    return %c0_i32, %c0_i32_0 : i32, i32
  }
  func.func @transform_15(%arg0: i32) -> (i32, i32) {
    %c0_i32 = arith.constant 0 : i32
    %c0_i32_0 = arith.constant 0 : i32
    return %arg0, %c0_i32 : i32, i32
  }
}

</mosaic_0001>

<llo_original>
// kernel: tpu_custom_call.1
$region0: #{tpu_custom_call.1}
  #allocation0 [shape = 'u32[]', space=smem, size = 0x4, offset = 0x4, fixed_abs, tag = 'smem constant byte address 0x4 - core index']
  #allocation1 [shape = 'u32[144,128]{1,0:T(1,128)}', space=vmem, size = 0x12000, scoped, tag = 'internal scratch']
  %s0 = inlined_call_operand.hbm [shape: f32[32,32], index: 0, kind: input, shape index: {}]
  %s1 = inlined_call_operand.vmem [shape: f32[1,32], index: 1, kind: input, shape index: {}]
  %s2 = inlined_call_operand.vmem [shape: f32[1,32], index: 2, kind: input, shape index: {}]
  %s3 = inlined_call_operand.vmem [shape: bf16[32,32], index: 3, kind: input, shape index: {}]
  %s4 = inlined_call_operand.hbm [shape: bf16[32,32], index: 4, kind: input, shape index: {}]
  %s5 = inlined_call_operand.hbm [shape: bf16[32,32], index: 5, kind: input, shape index: {}]
  %s6 = inlined_call_operand.hbm [shape: bf16[4,8,32], index: 6, kind: input, shape index: {}]
  %s7 = inlined_call_operand.vmem [shape: f32[1,32], index: 7, kind: input, shape index: {}]
  %s8 = inlined_call_operand.vmem [shape: f32[4,16,16], index: 8, kind: input, shape index: {}]
  %s9 = inlined_call_operand.vmem [shape: f32[1,32], index: 9, kind: input, shape index: {}]
  %s10 = inlined_call_operand.vmem [shape: f32[1,32], index: 10, kind: input, shape index: {}]
  %s11 = inlined_call_operand.hbm [shape: bf16[32,128], index: 11, kind: input, shape index: {}]
  %s12 = inlined_call_operand.vmem [shape: f32[1,128], index: 12, kind: input, shape index: {}]
  %s13 = inlined_call_operand.vmem [shape: bf16[128,32], index: 13, kind: input, shape index: {}]
  %s14 = inlined_call_operand.vmem [shape: f32[1,32], index: 14, kind: input, shape index: {}]
  %s15 = inlined_call_operand.hbm [shape: f32[32,32], index: 15, kind: output, shape index: {}]
  %s16 = sld [smem:[#allocation0]]
  $region90: #{tpu_custom_call.1} parent=0
    _
  %s18 = ssub.s32 1, %s16
  %s19 = scalar_select 0, %s18, %s16
  $region1: #{tpu_custom_call.1} parent=0
    #allocation2 [shape = 'u8[16384]{0}', space=vmem, size = 0x4000, scoped, tag = 'input window, operand 0, single buffered']
    #allocation3 [shape = 's32[1]{0}', space=sflag, size = 0x4, scoped, tag = 'scoped memory for tpu_custom_call.1']
    #allocation4 [shape = 's32[1]{0}', space=sflag, size = 0x4, scoped, tag = 'scoped memory for tpu_custom_call.1']
    #allocation5 [shape = 'u8[8192]{0}', space=vmem, size = 0x2000, scoped, tag = 'input window, operand 4, single buffered']
    #allocation6 [shape = 's32[1]{0}', space=sflag, size = 0x4, scoped, tag = 'scoped memory for tpu_custom_call.1']
    #allocation7 [shape = 'u8[8192]{0}', space=vmem, size = 0x2000, scoped, tag = 'input window, operand 5, single buffered']
    #allocation8 [shape = 'u8[8192]{0}', space=vmem, size = 0x2000, scoped, tag = 'input window, operand 6, single buffered']
    #allocation9 [shape = 's32[1]{0}', space=sflag, size = 0x4, scoped, tag = 'scoped memory for tpu_custom_call.1']
    #allocation10 [shape = 'u8[8192]{0}', space=vmem, size = 0x2000, scoped, tag = 'input window, operand 11, single buffered']
    #allocation11 [shape = 'u8[16384]{0}', space=vmem, size = 0x4000, scoped, tag = 'output window, operand 0, single buffered']
    %20 = vsyncpa [#allocation3], 0
    %21 = vsyncpa [#allocation6], 0
    %22 = vsyncpa [#allocation9], 0
    %23 = vsyncpa [#allocation4], 0
    // Predicated region
    $region2: #{tpu_custom_call.1} parent=1 // pred_check
      _
    $region3: #{tpu_custom_call.1} parent=1 // pred_check_branch
      %25 = sbr.rel (0) target = $region5
    $region4: #{tpu_custom_call.1} parent=1 // pred_region
      %s27 = ssub.s32 512, 512
      %28 = vsyncadd [#allocation3], %s27
      %s29 = sshll.u32 [#allocation2], 4
      %s30 = int_to_ptr.vmem [resolvable:$true] %s29
      %35 = dma.hbm_to_vmem [thread:$0]  %s0, 512, %s30, [#allocation3], 128, 128, 8
    $region5: #{tpu_custom_call.1} parent=1 // pred_fallthru
      _
    // Predicated region
    $region6: #{tpu_custom_call.1} parent=1 // pred_check
      _
    $region7: #{tpu_custom_call.1} parent=1 // pred_check_branch
      %37 = sbr.rel (0) target = $region9
    $region8: #{tpu_custom_call.1} parent=1 // pred_region
      _
    $region9: #{tpu_custom_call.1} parent=1 // pred_fallthru
      _
    // Predicated region
    $region10: #{tpu_custom_call.1} parent=1 // pred_check
      _
    $region11: #{tpu_custom_call.1} parent=1 // pred_check_branch
      %39 = sbr.rel (0) target = $region13
    $region12: #{tpu_custom_call.1} parent=1 // pred_region
      _
    $region13: #{tpu_custom_call.1} parent=1 // pred_fallthru
      _
    // Predicated region
    $region14: #{tpu_custom_call.1} parent=1 // pred_check
      _
    $region15: #{tpu_custom_call.1} parent=1 // pred_check_branch
      %41 = sbr.rel (0) target = $region17
    $region16: #{tpu_custom_call.1} parent=1 // pred_region
      _
    $region17: #{tpu_custom_call.1} parent=1 // pred_fallthru
      _
    // Predicated region
    $region18: #{tpu_custom_call.1} parent=1 // pred_check
      _
    $region19: #{tpu_custom_call.1} parent=1 // pred_check_branch
      %43 = sbr.rel (0) target = $region21
    $region20: #{tpu_custom_call.1} parent=1 // pred_region
      %s45 = ssub.s32 256, 256
      %46 = vsyncadd [#allocation6], %s45
      %s47 = sshll.u32 [#allocation5], 4
      %s48 = int_to_ptr.vmem [resolvable:$true] %s47
      %53 = dma.hbm_to_vmem [thread:$0]  %s4, 256, %s48, [#allocation6], 64, 64, 4
    $region21: #{tpu_custom_call.1} parent=1 // pred_fallthru
      _
    // Predicated region
    $region22: #{tpu_custom_call.1} parent=1 // pred_check
      _
    $region23: #{tpu_custom_call.1} parent=1 // pred_check_branch
      %55 = sbr.rel (0) target = $region25
    $region24: #{tpu_custom_call.1} parent=1 // pred_region
      %s57 = ssub.s32 256, 256
      %58 = vsyncadd [#allocation6], %s57
      %s59 = sshll.u32 [#allocation7], 4
      %s60 = int_to_ptr.vmem [resolvable:$true] %s59
      %65 = dma.hbm_to_vmem [thread:$0]  %s5, 256, %s60, [#allocation6], 64, 64, 4
    $region25: #{tpu_custom_call.1} parent=1 // pred_fallthru
      _
    // Predicated region
    $region26: #{tpu_custom_call.1} parent=1 // pred_check
      _
    $region27: #{tpu_custom_call.1} parent=1 // pred_check_branch
      %67 = sbr.rel (0) target = $region29
    $region28: #{tpu_custom_call.1} parent=1 // pred_region
      %s69 = ssub.s32 256, 256
      %70 = vsyncadd [#allocation9], %s69
      %s71 = sshll.u32 [#allocation8], 4
      %s72 = int_to_ptr.vmem [resolvable:$true] %s71
      %77 = dma.hbm_to_vmem [thread:$0]  %s6, 256, %s72, [#allocation9], 64, 64, 4
    $region29: #{tpu_custom_call.1} parent=1 // pred_fallthru
      _
    // Predicated region
    $region30: #{tpu_custom_call.1} parent=1 // pred_check
      _
    $region31: #{tpu_custom_call.1} parent=1 // pred_check_branch
      %79 = sbr.rel (0) target = $region33
    $region32: #{tpu_custom_call.1} parent=1 // pred_region
      _
    $region33: #{tpu_custom_call.1} parent=1 // pred_fallthru
      _
    // Predicated region
    $region34: #{tpu_custom_call.1} parent=1 // pred_check
      _
    $region35: #{tpu_custom_call.1} parent=1 // pred_check_branch
      %81 = sbr.rel (0) target = $region37
    $region36: #{tpu_custom_call.1} parent=1 // pred_region
      _
    $region37: #{tpu_custom_call.1} parent=1 // pred_fallthru
      _
    // Predicated region
    $region38: #{tpu_custom_call.1} parent=1 // pred_check
      _
    $region39: #{tpu_custom_call.1} parent=1 // pred_check_branch
      %83 = sbr.rel (0) target = $region41
    $region40: #{tpu_custom_call.1} parent=1 // pred_region
      _
    $region41: #{tpu_custom_call.1} parent=1 // pred_fallthru
      _
    // Predicated region
    $region42: #{tpu_custom_call.1} parent=1 // pred_check
      _
    $region43: #{tpu_custom_call.1} parent=1 // pred_check_branch
      %85 = sbr.rel (0) target = $region45
    $region44: #{tpu_custom_call.1} parent=1 // pred_region
      _
    $region45: #{tpu_custom_call.1} parent=1 // pred_fallthru
      _
    // Predicated region
    $region46: #{tpu_custom_call.1} parent=1 // pred_check
      _
    $region47: #{tpu_custom_call.1} parent=1 // pred_check_branch
      %87 = sbr.rel (0) target = $region49
    $region48: #{tpu_custom_call.1} parent=1 // pred_region
      %s89 = ssub.s32 256, 256
      %90 = vsyncadd [#allocation9], %s89
      %s91 = sshll.u32 [#allocation10], 4
      %s92 = int_to_ptr.vmem [resolvable:$true] %s91
      %97 = dma.hbm_to_vmem [thread:$0]  %s11, 256, %s92, [#allocation9], 64, 64, 4
    $region49: #{tpu_custom_call.1} parent=1 // pred_fallthru
      _
    // Predicated region
    $region50: #{tpu_custom_call.1} parent=1 // pred_check
      _
    $region51: #{tpu_custom_call.1} parent=1 // pred_check_branch
      %99 = sbr.rel (0) target = $region53
    $region52: #{tpu_custom_call.1} parent=1 // pred_region
      _
    $region53: #{tpu_custom_call.1} parent=1 // pred_fallthru
      _
    // Predicated region
    $region54: #{tpu_custom_call.1} parent=1 // pred_check
      _
    $region55: #{tpu_custom_call.1} parent=1 // pred_check_branch
      %101 = sbr.rel (0) target = $region57
    $region56: #{tpu_custom_call.1} parent=1 // pred_region
      _
    $region57: #{tpu_custom_call.1} parent=1 // pred_fallthru
      _
    // Predicated region
    $region58: #{tpu_custom_call.1} parent=1 // pred_check
      _
    $region59: #{tpu_custom_call.1} parent=1 // pred_check_branch
      %103 = sbr.rel (0) target = $region61
    $region60: #{tpu_custom_call.1} parent=1 // pred_region
      _
    $region61: #{tpu_custom_call.1} parent=1 // pred_fallthru
      _
    // Predicated region
    $region62: #{tpu_custom_call.1} parent=1 // pred_check
      _
    $region63: #{tpu_custom_call.1} parent=1 // pred_check_branch
      %105 = sbr.rel (0) target = $region65
    $region64: #{tpu_custom_call.1} parent=1 // pred_region
      %106 = dma.done [#allocation3], 512
    $region65: #{tpu_custom_call.1} parent=1 // pred_fallthru
      _
    // Predicated region
    $region66: #{tpu_custom_call.1} parent=1 // pred_check
      _
    $region67: #{tpu_custom_call.1} parent=1 // pred_check_branch
      %108 = sbr.rel (0) target = $region69
    $region68: #{tpu_custom_call.1} parent=1 // pred_region
      %109 = dma.done [#allocation6], 256
    $region69: #{tpu_custom_call.1} parent=1 // pred_fallthru
      _
    // Predicated region
    $region70: #{tpu_custom_call.1} parent=1 // pred_check
      _
    $region71: #{tpu_custom_call.1} parent=1 // pred_check_branch
      %111 = sbr.rel (0) target = $region73
    $region72: #{tpu_custom_call.1} parent=1 // pred_region
      %112 = dma.done [#allocation6], 256
    $region73: #{tpu_custom_call.1} parent=1 // pred_fallthru
      _
    // Predicated region
    $region74: #{tpu_custom_call.1} parent=1 // pred_check
      _
    $region75: #{tpu_custom_call.1} parent=1 // pred_check_branch
      %114 = sbr.rel (0) target = $region77
    $region76: #{tpu_custom_call.1} parent=1 // pred_region
      %115 = dma.done [#allocation9], 256
    $region77: #{tpu_custom_call.1} parent=1 // pred_fallthru
      _
    // Predicated region
    $region78: #{tpu_custom_call.1} parent=1 // pred_check
      _
    $region79: #{tpu_custom_call.1} parent=1 // pred_check_branch
      %117 = sbr.rel (0) target = $region81
    $region80: #{tpu_custom_call.1} parent=1 // pred_region
      %118 = dma.done [#allocation9], 256
    $region81: #{tpu_custom_call.1} parent=1 // pred_fallthru
      _
    %v120 = vld [vmem:[#allocation2] sm:$0xff]
    %v121 = vld [vmem:[#allocation2 + $0x8] sm:$0xff]
    %v122 = vld [vmem:[#allocation2 + $0x10] sm:$0xff]
    %v123 = vld [vmem:[#allocation2 + $0x18] sm:$0xff]
    %v124 = vld [vmem:[%s1] sm:$0x1]
    %v125 = vld [vmem:[%s2] sm:$0x1]
    %vm126 = vcmask 261120
    %v127 = vsel %vm126, %v120, 0.0
    %128 = vadd.xlane.f32.xlu0 %v127
    %v129 = vpop.xlane.xlu0 %128
    %v130 = vsel %vm126, %v121, 0.0
    %131 = vadd.xlane.f32.xlu0 %v130
    %v132 = vpop.xlane.xlu0 %131
    %v133 = vsel %vm126, %v122, 0.0
    %134 = vadd.xlane.f32.xlu0 %v133
    %v135 = vpop.xlane.xlu0 %134
    %v136 = vsel %vm126, %v123, 0.0
    %137 = vadd.xlane.f32.xlu0 %v136
    %v138 = vpop.xlane.xlu0 %137
    %v139 = vrcp.pop 32.0
    %v140 = vmul.f32 %v129, %v139
    %v141 = vmul.f32 %v132, %v139
    %v142 = vmul.f32 %v135, %v139
    %v143 = vmul.f32 %v138, %v139
    %v144 = vsub.f32 %v120, %v140
    %v145 = vsub.f32 %v121, %v141
    %v146 = vsub.f32 %v122, %v142
    %v147 = vsub.f32 %v123, %v143
    %v148 = vmul.f32 %v144, %v144
    %v149 = vmul.f32 %v145, %v145
    %v150 = vmul.f32 %v146, %v146
    %v151 = vmul.f32 %v147, %v147
    %v152 = vsel %vm126, %v148, 0.0
    %153 = vadd.xlane.f32.xlu0 %v152
    %v154 = vpop.xlane.xlu0 %153
    %v155 = vsel %vm126, %v149, 0.0
    %156 = vadd.xlane.f32.xlu0 %v155
    %v157 = vpop.xlane.xlu0 %156
    %v158 = vsel %vm126, %v150, 0.0
    %159 = vadd.xlane.f32.xlu0 %v158
    %v160 = vpop.xlane.xlu0 %159
    %v161 = vsel %vm126, %v151, 0.0
    %162 = vadd.xlane.f32.xlu0 %v161
    %v163 = vpop.xlane.xlu0 %162
    %v164 = vmul.f32 %v154, %v139
    %v165 = vmul.f32 %v157, %v139
    %v166 = vmul.f32 %v160, %v139
    %v167 = vmul.f32 %v163, %v139
    %v168 = vadd.f32 %v164, 1e-05
    %v169 = vadd.f32 %v165, 1e-05
    %v170 = vadd.f32 %v166, 1e-05
    %v171 = vadd.f32 %v167, 1e-05
    %v172 = vrsqrt.pop %v168
    %v173 = vrsqrt.pop %v169
    %v174 = vrsqrt.pop %v170
    %v175 = vrsqrt.pop %v171
    %v176 = vmul.f32 %v144, %v172
    %v177 = vmul.f32 %v145, %v173
    %v178 = vmul.f32 %v146, %v174
    %v179 = vmul.f32 %v147, %v175
    %v181 = vlaneseq
    %v182 = vshrl.u32 %v181, 7
    %v183 = vsub.s32 0, %v182
    %v184 = vrot.slane %v124, %v183
    %v186 = vmul.f32 %v176, %v184
    %v187 = vmul.f32 %v177, %v184
    %v188 = vmul.f32 %v178, %v184
    %v189 = vmul.f32 %v179, %v184
    %v191 = vlaneseq
    %v192 = vshrl.u32 %v191, 7
    %v193 = vsub.s32 0, %v192
    %v194 = vrot.slane %v125, %v193
    %v196 = vadd.f32 %v186, %v194
    %v197 = vadd.f32 %v187, %v194
    %v198 = vadd.f32 %v188, %v194
    %v199 = vadd.f32 %v189, %v194
    %v200 = vpack.c.bf16 %v197, %v196
    %v201 = vpack.c.bf16 %v199, %v198
    %v202 = vld [vmem:[%s3] sm:$0xf]
    %v203 = vld [vmem:[%s3 + $0x4] sm:$0xf]
    %v204 = vld [vmem:[%s3 + $0x8] sm:$0xf]
    %v205 = vld [vmem:[%s3 + $0xc] sm:$0xf]
    %v210 = vunpack.c.l.b16 %v202
    %v211 = vunpack.c.l.b16 %v203
    %v212 = vunpack.c.l.b16 %v204
    %v213 = vunpack.c.l.b16 %v205
    %v214 = vpack.c.b16 %v211, %v210
    %v215 = vpack.c.b16 %v213, %v212
    %v219 = vsel %vm126, %v200, 0
    %v222 = vsel %vm126, %v201, 0
    %224 = vmatprep.subr.bf16.mxu0 0
    %225 = vmatpush1.bf16.msra.mxu0 0
    %226 = vmatprep.subr.bf16.mxu0 0
    %227 = vmatpush1.bf16.msra.mxu0 0
    %228 = vmatprep.subr.bf16.mxu0 0
    %229 = vmatpush1.bf16.msra.mxu0 0
    %230 = vmatprep.subr.bf16.mxu0 0
    %231 = vmatpush1.bf16.msra.mxu0 0
    %232 = vmatprep.subr.bf16.mxu0 0
    %233 = vmatpush1.bf16.msra.mxu0 0
    %234 = vmatprep.subr.bf16.mxu0 0
    %235 = vmatpush1.bf16.msra.mxu0 0
    %236 = vmatprep.subr.bf16.mxu0 0
    %237 = vmatpush1.bf16.msra.mxu0 %v215
    %238 = vmatprep.subr.bf16.mxu0 0
    %239 = vmatpush1.bf16.msra.mxu0 %v214
    %240 = vmatprep.subr.bf16.mxu0 0
    %241 = vmatpush2.bf16.msra.mxu0 0
    %242 = vmatprep.subr.bf16.mxu0 0
    %243 = vmatpush2.bf16.msra.mxu0 0
    %244 = vmatprep.subr.bf16.mxu0 0
    %245 = vmatpush2.bf16.msra.mxu0 0
    %246 = vmatprep.subr.bf16.mxu0 0
    %247 = vmatpush2.bf16.msra.mxu0 0
    %248 = vmatprep.subr.bf16.mxu0 0
    %249 = vmatpush2.bf16.msra.mxu0 0
    %250 = vmatprep.subr.bf16.mxu0 0
    %251 = vmatpush2.bf16.msra.mxu0 0
    %252 = vmatprep.subr.bf16.mxu0 0
    %253 = vmatpush2.bf16.msra.mxu0 0
    %254 = vmatprep.subr.bf16.mxu0 0
    %255 = vmatpush2.bf16.msra.mxu0 0
    %256 = vmatprep.mubr.bf16.mxu0 0
    %257 = vmatmul.mubr.bf16.gmra.mxu0 %v219
    %v258 = vpop.f32.mrf.mxu0
    %v259 = vadd.f32 0.0, %v258
    %v260 = vpop.f32.mrf.mxu0
    %v261 = vpop.f32.mrf.mxu0
    %v262 = vadd.f32 0.0, %v261
    %v263 = vpop.f32.mrf.mxu0
    %264 = vmatprep.mubr.bf16.mxu0 0
    %265 = vmatmul.mubr.bf16.gmra.mxu0 %v222
    %v266 = vpop.f32.mrf.mxu0
    %v267 = vadd.f32 0.0, %v266
    %v268 = vpop.f32.mrf.mxu0
    %v269 = vpop.f32.mrf.mxu0
    %v270 = vadd.f32 0.0, %v269
    %v271 = vpop.f32.mrf.mxu0
    %272 = vdwg.mxu0
    %v273 = vld [vmem:[#allocation5] sm:$0xf]
    %v274 = vld [vmem:[#allocation5 + $0x4] sm:$0xf]
    %v275 = vld [vmem:[#allocation5 + $0x8] sm:$0xf]
    %v276 = vld [vmem:[#allocation5 + $0xc] sm:$0xf]
    %v281 = vunpack.c.l.b16 %v273
    %v282 = vunpack.c.l.b16 %v274
    %v283 = vunpack.c.l.b16 %v275
    %v284 = vunpack.c.l.b16 %v276
    %v285 = vpack.c.b16 %v282, %v281
    %v286 = vpack.c.b16 %v284, %v283
    %289 = vmatprep.subr.bf16.mxu0 0
    %290 = vmatpush1.bf16.msra.mxu0 0
    %291 = vmatprep.subr.bf16.mxu0 0
    %292 = vmatpush1.bf16.msra.mxu0 0
    %293 = vmatprep.subr.bf16.mxu0 0
    %294 = vmatpush1.bf16.msra.mxu0 0
    %295 = vmatprep.subr.bf16.mxu0 0
    %296 = vmatpush1.bf16.msra.mxu0 0
    %297 = vmatprep.subr.bf16.mxu0 0
    %298 = vmatpush1.bf16.msra.mxu0 0
    %299 = vmatprep.subr.bf16.mxu0 0
    %300 = vmatpush1.bf16.msra.mxu0 0
    %301 = vmatprep.subr.bf16.mxu0 0
    %302 = vmatpush1.bf16.msra.mxu0 %v286
    %303 = vmatprep.subr.bf16.mxu0 0
    %304 = vmatpush1.bf16.msra.mxu0 %v285
    %305 = vmatprep.subr.bf16.mxu0 0
    %306 = vmatpush2.bf16.msra.mxu0 0
    %307 = vmatprep.subr.bf16.mxu0 0
    %308 = vmatpush2.bf16.msra.mxu0 0
    %309 = vmatprep.subr.bf16.mxu0 0
    %310 = vmatpush2.bf16.msra.mxu0 0
    %311 = vmatprep.subr.bf16.mxu0 0
    %312 = vmatpush2.bf16.msra.mxu0 0
    %313 = vmatprep.subr.bf16.mxu0 0
    %314 = vmatpush2.bf16.msra.mxu0 0
    %315 = vmatprep.subr.bf16.mxu0 0
    %316 = vmatpush2.bf16.msra.mxu0 0
    %317 = vmatprep.subr.bf16.mxu0 0
    %318 = vmatpush2.bf16.msra.mxu0 0
    %319 = vmatprep.subr.bf16.mxu0 0
    %320 = vmatpush2.bf16.msra.mxu0 0
    %321 = vmatprep.mubr.bf16.mxu0 0
    %322 = vmatmul.mubr.bf16.gmra.mxu0 %v219
    %v323 = vpop.f32.mrf.mxu0
    %v324 = vadd.f32 0.0, %v323
    %v325 = vpop.f32.mrf.mxu0
    %v326 = vpop.f32.mrf.mxu0
    %v327 = vadd.f32 0.0, %v326
    %v328 = vpop.f32.mrf.mxu0
    %329 = vmatprep.mubr.bf16.mxu0 0
    %330 = vmatmul.mubr.bf16.gmra.mxu0 %v222
    %v331 = vpop.f32.mrf.mxu0
    %v332 = vadd.f32 0.0, %v331
    %v333 = vpop.f32.mrf.mxu0
    %v334 = vpop.f32.mrf.mxu0
    %v335 = vadd.f32 0.0, %v334
    %v336 = vpop.f32.mrf.mxu0
    %337 = vdwg.mxu0
    %v338 = vld [vmem:[#allocation7] sm:$0xf]
    %v339 = vld [vmem:[#allocation7 + $0x4] sm:$0xf]
    %v340 = vld [vmem:[#allocation7 + $0x8] sm:$0xf]
    %v341 = vld [vmem:[#allocation7 + $0xc] sm:$0xf]
    %v346 = vunpack.c.l.b16 %v338
    %v347 = vunpack.c.l.b16 %v339
    %v348 = vunpack.c.l.b16 %v340
    %v349 = vunpack.c.l.b16 %v341
    %v350 = vpack.c.b16 %v347, %v346
    %v351 = vpack.c.b16 %v349, %v348
    %354 = vmatprep.subr.bf16.mxu0 0
    %355 = vmatpush1.bf16.msra.mxu0 0
    %356 = vmatprep.subr.bf16.mxu0 0
    %357 = vmatpush1.bf16.msra.mxu0 0
    %358 = vmatprep.subr.bf16.mxu0 0
    %359 = vmatpush1.bf16.msra.mxu0 0
    %360 = vmatprep.subr.bf16.mxu0 0
    %361 = vmatpush1.bf16.msra.mxu0 0
    %362 = vmatprep.subr.bf16.mxu0 0
    %363 = vmatpush1.bf16.msra.mxu0 0
    %364 = vmatprep.subr.bf16.mxu0 0
    %365 = vmatpush1.bf16.msra.mxu0 0
    %366 = vmatprep.subr.bf16.mxu0 0
    %367 = vmatpush1.bf16.msra.mxu0 %v351
    %368 = vmatprep.subr.bf16.mxu0 0
    %369 = vmatpush1.bf16.msra.mxu0 %v350
    %370 = vmatprep.subr.bf16.mxu0 0
    %371 = vmatpush2.bf16.msra.mxu0 0
    %372 = vmatprep.subr.bf16.mxu0 0
    %373 = vmatpush2.bf16.msra.mxu0 0
    %374 = vmatprep.subr.bf16.mxu0 0
    %375 = vmatpush2.bf16.msra.mxu0 0
    %376 = vmatprep.subr.bf16.mxu0 0
    %377 = vmatpush2.bf16.msra.mxu0 0
    %378 = vmatprep.subr.bf16.mxu0 0
    %379 = vmatpush2.bf16.msra.mxu0 0
    %380 = vmatprep.subr.bf16.mxu0 0
    %381 = vmatpush2.bf16.msra.mxu0 0
    %382 = vmatprep.subr.bf16.mxu0 0
    %383 = vmatpush2.bf16.msra.mxu0 0
    %384 = vmatprep.subr.bf16.mxu0 0
    %385 = vmatpush2.bf16.msra.mxu0 0
    %386 = vmatprep.mubr.bf16.mxu0 0
    %387 = vmatmul.mubr.bf16.gmra.mxu0 %v219
    %v388 = vpop.f32.mrf.mxu0
    %v389 = vadd.f32 0.0, %v388
    %v390 = vpop.f32.mrf.mxu0
    %v391 = vpop.f32.mrf.mxu0
    %v392 = vadd.f32 0.0, %v391
    %v393 = vpop.f32.mrf.mxu0
    %394 = vmatprep.mubr.bf16.mxu0 0
    %395 = vmatmul.mubr.bf16.gmra.mxu0 %v222
    %v396 = vpop.f32.mrf.mxu0
    %v397 = vadd.f32 0.0, %v396
    %v398 = vpop.f32.mrf.mxu0
    %v399 = vpop.f32.mrf.mxu0
    %v400 = vadd.f32 0.0, %v399
    %v401 = vpop.f32.mrf.mxu0
    %402 = vdwg.mxu0
    %v403 = vpack.c.bf16 %v262, %v259
    %v404 = vpack.c.bf16 %v270, %v267
    %v405 = vpack.c.bf16 %v327, %v324
    %v406 = vpack.c.bf16 %v335, %v332
    %v407 = vpack.c.bf16 %v392, %v389
    %v408 = vpack.c.bf16 %v400, %v397
    %v409 = vld [vmem:[%s8] sm:$0xff]
    %v410 = vld [vmem:[%s8 + $0x8] sm:$0xff]
    %vm411 = vcmask 64512
    %v413 = vsel %vm411, %v403, 0
    %v416 = vsel %vm411, %v405, 0
    %418 = vmatprep.subr.bf16.mxu0 0
    %419 = vmatpush1.bf16.xpose.msra.mxu0 0
    %420 = vmatprep.subr.bf16.mxu0 0
    %421 = vmatpush1.bf16.xpose.msra.mxu0 0
    %422 = vmatprep.subr.bf16.mxu0 0
    %423 = vmatpush1.bf16.xpose.msra.mxu0 0
    %424 = vmatprep.subr.bf16.mxu0 0
    %425 = vmatpush1.bf16.xpose.msra.mxu0 0
    %426 = vmatprep.subr.bf16.mxu0 0
    %427 = vmatpush1.bf16.xpose.msra.mxu0 0
    %428 = vmatprep.subr.bf16.mxu0 0
    %429 = vmatpush1.bf16.xpose.msra.mxu0 0
    %430 = vmatprep.subr.bf16.mxu0 0
    %431 = vmatpush1.bf16.xpose.msra.mxu0 0
    %432 = vmatprep.subr.bf16.mxu0 0
    %433 = vmatpush1.bf16.xpose.msra.mxu0 %v416
    %434 = vmatprep.subr.bf16.mxu0 0
    %435 = vmatpush2.bf16.xpose.msra.mxu0 0
    %436 = vmatprep.subr.bf16.mxu0 0
    %437 = vmatpush2.bf16.xpose.msra.mxu0 0
    %438 = vmatprep.subr.bf16.mxu0 0
    %439 = vmatpush2.bf16.xpose.msra.mxu0 0
    %440 = vmatprep.subr.bf16.mxu0 0
    %441 = vmatpush2.bf16.xpose.msra.mxu0 0
    %442 = vmatprep.subr.bf16.mxu0 0
    %443 = vmatpush2.bf16.xpose.msra.mxu0 0
    %444 = vmatprep.subr.bf16.mxu0 0
    %445 = vmatpush2.bf16.xpose.msra.mxu0 0
    %446 = vmatprep.subr.bf16.mxu0 0
    %447 = vmatpush2.bf16.xpose.msra.mxu0 0
    %448 = vmatprep.subr.bf16.mxu0 0
    %449 = vmatpush2.bf16.xpose.msra.mxu0 0
    %450 = vmatprep.mubr.bf16.mxu0 0
    %451 = vmatmul.mubr.bf16.gmra.mxu0 %v413
    %v452 = vpop.f32.mrf.mxu0
    %v453 = vadd.f32 %v409, %v452
    %v454 = vpop.f32.mrf.mxu0
    %v455 = vpop.f32.mrf.mxu0
    %v456 = vadd.f32 %v410, %v455
    %v457 = vpop.f32.mrf.mxu0
    %458 = vdwg.mxu0
    %v460 = vsel %vm411, %v404, 0
    %v463 = vsel %vm411, %v406, 0
    %465 = vmatprep.subr.bf16.mxu0 0
    %466 = vmatpush1.bf16.xpose.msra.mxu0 0
    %467 = vmatprep.subr.bf16.mxu0 0
    %468 = vmatpush1.bf16.xpose.msra.mxu0 0
    %469 = vmatprep.subr.bf16.mxu0 0
    %470 = vmatpush1.bf16.xpose.msra.mxu0 0
    %471 = vmatprep.subr.bf16.mxu0 0
    %472 = vmatpush1.bf16.xpose.msra.mxu0 0
    %473 = vmatprep.subr.bf16.mxu0 0
    %474 = vmatpush1.bf16.xpose.msra.mxu0 0
    %475 = vmatprep.subr.bf16.mxu0 0
    %476 = vmatpush1.bf16.xpose.msra.mxu0 0
    %477 = vmatprep.subr.bf16.mxu0 0
    %478 = vmatpush1.bf16.xpose.msra.mxu0 0
    %479 = vmatprep.subr.bf16.mxu0 0
    %480 = vmatpush1.bf16.xpose.msra.mxu0 %v463
    %481 = vmatprep.subr.bf16.mxu0 0
    %482 = vmatpush2.bf16.xpose.msra.mxu0 0
    %483 = vmatprep.subr.bf16.mxu0 0
    %484 = vmatpush2.bf16.xpose.msra.mxu0 0
    %485 = vmatprep.subr.bf16.mxu0 0
    %486 = vmatpush2.bf16.xpose.msra.mxu0 0
    %487 = vmatprep.subr.bf16.mxu0 0
    %488 = vmatpush2.bf16.xpose.msra.mxu0 0
    %489 = vmatprep.subr.bf16.mxu0 0
    %490 = vmatpush2.bf16.xpose.msra.mxu0 0
    %491 = vmatprep.subr.bf16.mxu0 0
    %492 = vmatpush2.bf16.xpose.msra.mxu0 0
    %493 = vmatprep.subr.bf16.mxu0 0
    %494 = vmatpush2.bf16.xpose.msra.mxu0 0
    %495 = vmatprep.subr.bf16.mxu0 0
    %496 = vmatpush2.bf16.xpose.msra.mxu0 0
    %497 = vmatprep.mubr.bf16.mxu0 0
    %498 = vmatmul.mubr.bf16.gmra.mxu0 %v460
    %v499 = vpop.f32.mrf.mxu0
    %v500 = vadd.f32 %v409, %v499
    %v501 = vpop.f32.mrf.mxu0
    %v502 = vpop.f32.mrf.mxu0
    %v503 = vadd.f32 %v410, %v502
    %v504 = vpop.f32.mrf.mxu0
    %505 = vdwg.mxu0
    %vm506 = vcmask 130048
    %v507 = vsel %vm506, %v453, -inf
    %508 = vmax.xlane.f32.xlu0 %v507
    %v509 = vpop.xlane.xlu0 %508
    %v510 = vsel %vm506, %v456, -inf
    %511 = vmax.xlane.f32.xlu0 %v510
    %v512 = vpop.xlane.xlu0 %511
    %v513 = vsel %vm506, %v500, -inf
    %514 = vmax.xlane.f32.xlu0 %v513
    %v515 = vpop.xlane.xlu0 %514
    %v516 = vsel %vm506, %v503, -inf
    %517 = vmax.xlane.f32.xlu0 %v516
    %v518 = vpop.xlane.xlu0 %517
    %v519 = vsub.f32 %v453, %v509
    %v520 = vsub.f32 %v456, %v512
    %v521 = vsub.f32 %v500, %v515
    %v522 = vsub.f32 %v503, %v518
    %v523 = vmul.f32 %v519, 1.442695
    %v524 = vpow.pop %v523
    %v525 = vmul.f32 %v520, 1.442695
    %v526 = vpow.pop %v525
    %v527 = vmul.f32 %v521, 1.442695
    %v528 = vpow.pop %v527
    %v529 = vmul.f32 %v522, 1.442695
    %v530 = vpow.pop %v529
    %v531 = vsel %vm506, %v524, 0.0
    %532 = vadd.xlane.f32.xlu0 %v531
    %v533 = vpop.xlane.xlu0 %532
    %v534 = vsel %vm506, %v526, 0.0
    %535 = vadd.xlane.f32.xlu0 %v534
    %v536 = vpop.xlane.xlu0 %535
    %v537 = vsel %vm506, %v528, 0.0
    %538 = vadd.xlane.f32.xlu0 %v537
    %v539 = vpop.xlane.xlu0 %538
    %v540 = vsel %vm506, %v530, 0.0
    %541 = vadd.xlane.f32.xlu0 %v540
    %v542 = vpop.xlane.xlu0 %541
    %v543 = vrcp.pop %v533
    %v544 = vrcp.pop %v536
    %v545 = vrcp.pop %v539
    %v546 = vrcp.pop %v542
    %v547 = vmul.f32 %v524, %v543
    %v548 = vmul.f32 %v526, %v544
    %v549 = vmul.f32 %v528, %v545
    %v550 = vmul.f32 %v530, %v546
    %v551 = vpack.c.bf16 %v548, %v547
    %v552 = vpack.c.bf16 %v550, %v549
    %v554 = vsel %vm506, %v551, 0
    %556 = vmatprep.subr.bf16.mxu0 0
    %557 = vmatpush1.bf16.msra.mxu0 0
    %558 = vmatprep.subr.bf16.mxu0 0
    %559 = vmatpush1.bf16.msra.mxu0 0
    %560 = vmatprep.subr.bf16.mxu0 0
    %561 = vmatpush1.bf16.msra.mxu0 0
    %562 = vmatprep.subr.bf16.mxu0 0
    %563 = vmatpush1.bf16.msra.mxu0 0
    %564 = vmatprep.subr.bf16.mxu0 0
    %565 = vmatpush1.bf16.msra.mxu0 0
    %566 = vmatprep.subr.bf16.mxu0 0
    %567 = vmatpush1.bf16.msra.mxu0 0
    %568 = vmatprep.subr.bf16.mxu0 0
    %569 = vmatpush1.bf16.msra.mxu0 0
    %570 = vmatprep.subr.bf16.mxu0 0
    %571 = vmatpush1.bf16.msra.mxu0 %v407
    %572 = vmatprep.subr.bf16.mxu0 0
    %573 = vmatpush2.bf16.msra.mxu0 0
    %574 = vmatprep.subr.bf16.mxu0 0
    %575 = vmatpush2.bf16.msra.mxu0 0
    %576 = vmatprep.subr.bf16.mxu0 0
    %577 = vmatpush2.bf16.msra.mxu0 0
    %578 = vmatprep.subr.bf16.mxu0 0
    %579 = vmatpush2.bf16.msra.mxu0 0
    %580 = vmatprep.subr.bf16.mxu0 0
    %581 = vmatpush2.bf16.msra.mxu0 0
    %582 = vmatprep.subr.bf16.mxu0 0
    %583 = vmatpush2.bf16.msra.mxu0 0
    %584 = vmatprep.subr.bf16.mxu0 0
    %585 = vmatpush2.bf16.msra.mxu0 0
    %586 = vmatprep.subr.bf16.mxu0 0
    %587 = vmatpush2.bf16.msra.mxu0 0
    %588 = vmatprep.mubr.bf16.mxu0 0
    %589 = vmatmul.mubr.bf16.gmra.mxu0 %v554
    %v590 = vpop.f32.mrf.mxu0
    %v591 = vadd.f32 0.0, %v590
    %v592 = vpop.f32.mrf.mxu0
    %v593 = vpop.f32.mrf.mxu0
    %v594 = vadd.f32 0.0, %v593
    %v595 = vpop.f32.mrf.mxu0
    %596 = vdwg.mxu0
    %v598 = vsel %vm506, %v552, 0
    %600 = vmatprep.subr.bf16.mxu0 0
    %601 = vmatpush1.bf16.msra.mxu0 0
    %602 = vmatprep.subr.bf16.mxu0 0
    %603 = vmatpush1.bf16.msra.mxu0 0
    %604 = vmatprep.subr.bf16.mxu0 0
    %605 = vmatpush1.bf16.msra.mxu0 0
    %606 = vmatprep.subr.bf16.mxu0 0
    %607 = vmatpush1.bf16.msra.mxu0 0
    %608 = vmatprep.subr.bf16.mxu0 0
    %609 = vmatpush1.bf16.msra.mxu0 0
    %610 = vmatprep.subr.bf16.mxu0 0
    %611 = vmatpush1.bf16.msra.mxu0 0
    %612 = vmatprep.subr.bf16.mxu0 0
    %613 = vmatpush1.bf16.msra.mxu0 0
    %614 = vmatprep.subr.bf16.mxu0 0
    %615 = vmatpush1.bf16.msra.mxu0 %v408
    %616 = vmatprep.subr.bf16.mxu0 0
    %617 = vmatpush2.bf16.msra.mxu0 0
    %618 = vmatprep.subr.bf16.mxu0 0
    %619 = vmatpush2.bf16.msra.mxu0 0
    %620 = vmatprep.subr.bf16.mxu0 0
    %621 = vmatpush2.bf16.msra.mxu0 0
    %622 = vmatprep.subr.bf16.mxu0 0
    %623 = vmatpush2.bf16.msra.mxu0 0
    %624 = vmatprep.subr.bf16.mxu0 0
    %625 = vmatpush2.bf16.msra.mxu0 0
    %626 = vmatprep.subr.bf16.mxu0 0
    %627 = vmatpush2.bf16.msra.mxu0 0
    %628 = vmatprep.subr.bf16.mxu0 0
    %629 = vmatpush2.bf16.msra.mxu0 0
    %630 = vmatprep.subr.bf16.mxu0 0
    %631 = vmatpush2.bf16.msra.mxu0 0
    %632 = vmatprep.mubr.bf16.mxu0 0
    %633 = vmatmul.mubr.bf16.gmra.mxu0 %v598
    %v634 = vpop.f32.mrf.mxu0
    %v635 = vadd.f32 0.0, %v634
    %v636 = vpop.f32.mrf.mxu0
    %v637 = vpop.f32.mrf.mxu0
    %v638 = vadd.f32 0.0, %v637
    %v639 = vpop.f32.mrf.mxu0
    %640 = vdwg.mxu0
    %v641 = vpack.c.bf16 %v594, %v591
    %v642 = vpack.c.bf16 %v638, %v635
    %v643 = vld [vmem:[#allocation8] sm:$0xf]
    %s644 = scalar_lea.vmem %s8, 16
    %v645 = vld [vmem:[%s644] sm:$0xff]
    %v646 = vld [vmem:[%s644 + $0x8] sm:$0xff]
    %648 = vrot.lane.b32.xlu0 %v403, 120
    %v649 = vpop.permute.xlu0 %648
    %651 = vrot.lane.b32.xlu0 %v405, 120
    %v652 = vpop.permute.xlu0 %651
    %v654 = vsel %vm411, %v649, 0
    %v657 = vsel %vm411, %v652, 0
    %659 = vmatprep.subr.bf16.mxu0 0
    %660 = vmatpush1.bf16.xpose.msra.mxu0 0
    %661 = vmatprep.subr.bf16.mxu0 0
    %662 = vmatpush1.bf16.xpose.msra.mxu0 0
    %663 = vmatprep.subr.bf16.mxu0 0
    %664 = vmatpush1.bf16.xpose.msra.mxu0 0
    %665 = vmatprep.subr.bf16.mxu0 0
    %666 = vmatpush1.bf16.xpose.msra.mxu0 0
    %667 = vmatprep.subr.bf16.mxu0 0
    %668 = vmatpush1.bf16.xpose.msra.mxu0 0
    %669 = vmatprep.subr.bf16.mxu0 0
    %670 = vmatpush1.bf16.xpose.msra.mxu0 0
    %671 = vmatprep.subr.bf16.mxu0 0
    %672 = vmatpush1.bf16.xpose.msra.mxu0 0
    %673 = vmatprep.subr.bf16.mxu0 0
    %674 = vmatpush1.bf16.xpose.msra.mxu0 %v657
    %675 = vmatprep.subr.bf16.mxu0 0
    %676 = vmatpush2.bf16.xpose.msra.mxu0 0
    %677 = vmatprep.subr.bf16.mxu0 0
    %678 = vmatpush2.bf16.xpose.msra.mxu0 0
    %679 = vmatprep.subr.bf16.mxu0 0
    %680 = vmatpush2.bf16.xpose.msra.mxu0 0
    %681 = vmatprep.subr.bf16.mxu0 0
    %682 = vmatpush2.bf16.xpose.msra.mxu0 0
    %683 = vmatprep.subr.bf16.mxu0 0
    %684 = vmatpush2.bf16.xpose.msra.mxu0 0
    %685 = vmatprep.subr.bf16.mxu0 0
    %686 = vmatpush2.bf16.xpose.msra.mxu0 0
    %687 = vmatprep.subr.bf16.mxu0 0
    %688 = vmatpush2.bf16.xpose.msra.mxu0 0
    %689 = vmatprep.subr.bf16.mxu0 0
    %690 = vmatpush2.bf16.xpose.msra.mxu0 0
    %691 = vmatprep.mubr.bf16.mxu0 0
    %692 = vmatmul.mubr.bf16.gmra.mxu0 %v654
    %v693 = vpop.f32.mrf.mxu0
    %v694 = vadd.f32 %v645, %v693
    %v695 = vpop.f32.mrf.mxu0
    %v696 = vpop.f32.mrf.mxu0
    %v697 = vadd.f32 %v646, %v696
    %v698 = vpop.f32.mrf.mxu0
    %699 = vdwg.mxu0
    %701 = vrot.lane.b32.xlu0 %v404, 120
    %v702 = vpop.permute.xlu0 %701
    %704 = vrot.lane.b32.xlu0 %v406, 120
    %v705 = vpop.permute.xlu0 %704
    %v707 = vsel %vm411, %v702, 0
    %v710 = vsel %vm411, %v705, 0
    %712 = vmatprep.subr.bf16.mxu0 0
    %713 = vmatpush1.bf16.xpose.msra.mxu0 0
    %714 = vmatprep.subr.bf16.mxu0 0
    %715 = vmatpush1.bf16.xpose.msra.mxu0 0
    %716 = vmatprep.subr.bf16.mxu0 0
    %717 = vmatpush1.bf16.xpose.msra.mxu0 0
    %718 = vmatprep.subr.bf16.mxu0 0
    %719 = vmatpush1.bf16.xpose.msra.mxu0 0
    %720 = vmatprep.subr.bf16.mxu0 0
    %721 = vmatpush1.bf16.xpose.msra.mxu0 0
    %722 = vmatprep.subr.bf16.mxu0 0
    %723 = vmatpush1.bf16.xpose.msra.mxu0 0
    %724 = vmatprep.subr.bf16.mxu0 0
    %725 = vmatpush1.bf16.xpose.msra.mxu0 0
    %726 = vmatprep.subr.bf16.mxu0 0
    %727 = vmatpush1.bf16.xpose.msra.mxu0 %v710
    %728 = vmatprep.subr.bf16.mxu0 0
    %729 = vmatpush2.bf16.xpose.msra.mxu0 0
    %730 = vmatprep.subr.bf16.mxu0 0
    %731 = vmatpush2.bf16.xpose.msra.mxu0 0
    %732 = vmatprep.subr.bf16.mxu0 0
    %733 = vmatpush2.bf16.xpose.msra.mxu0 0
    %734 = vmatprep.subr.bf16.mxu0 0
    %735 = vmatpush2.bf16.xpose.msra.mxu0 0
    %736 = vmatprep.subr.bf16.mxu0 0
    %737 = vmatpush2.bf16.xpose.msra.mxu0 0
    %738 = vmatprep.subr.bf16.mxu0 0
    %739 = vmatpush2.bf16.xpose.msra.mxu0 0
    %740 = vmatprep.subr.bf16.mxu0 0
    %741 = vmatpush2.bf16.xpose.msra.mxu0 0
    %742 = vmatprep.subr.bf16.mxu0 0
    %743 = vmatpush2.bf16.xpose.msra.mxu0 0
    %744 = vmatprep.mubr.bf16.mxu0 0
    %745 = vmatmul.mubr.bf16.gmra.mxu0 %v707
    %v746 = vpop.f32.mrf.mxu0
    %v747 = vadd.f32 %v645, %v746
    %v748 = vpop.f32.mrf.mxu0
    %v749 = vpop.f32.mrf.mxu0
    %v750 = vadd.f32 %v646, %v749
    %v751 = vpop.f32.mrf.mxu0
    %752 = vdwg.mxu0
    %v753 = vsel %vm506, %v694, -inf
    %754 = vmax.xlane.f32.xlu0 %v753
    %v755 = vpop.xlane.xlu0 %754
    %v756 = vsel %vm506, %v697, -inf
    %757 = vmax.xlane.f32.xlu0 %v756
    %v758 = vpop.xlane.xlu0 %757
    %v759 = vsel %vm506, %v747, -inf
    %760 = vmax.xlane.f32.xlu0 %v759
    %v761 = vpop.xlane.xlu0 %760
    %v762 = vsel %vm506, %v750, -inf
    %763 = vmax.xlane.f32.xlu0 %v762
    %v764 = vpop.xlane.xlu0 %763
    %v765 = vsub.f32 %v694, %v755
    %v766 = vsub.f32 %v697, %v758
    %v767 = vsub.f32 %v747, %v761
    %v768 = vsub.f32 %v750, %v764
    %v769 = vmul.f32 %v765, 1.442695
    %v770 = vpow.pop %v769
    %v771 = vmul.f32 %v766, 1.442695
    %v772 = vpow.pop %v771
    %v773 = vmul.f32 %v767, 1.442695
    %v774 = vpow.pop %v773
    %v775 = vmul.f32 %v768, 1.442695
    %v776 = vpow.pop %v775
    %v777 = vsel %vm506, %v770, 0.0
    %778 = vadd.xlane.f32.xlu0 %v777
    %v779 = vpop.xlane.xlu0 %778
    %v780 = vsel %vm506, %v772, 0.0
    %781 = vadd.xlane.f32.xlu0 %v780
    %v782 = vpop.xlane.xlu0 %781
    %v783 = vsel %vm506, %v774, 0.0
    %784 = vadd.xlane.f32.xlu0 %v783
    %v785 = vpop.xlane.xlu0 %784
    %v786 = vsel %vm506, %v776, 0.0
    %787 = vadd.xlane.f32.xlu0 %v786
    %v788 = vpop.xlane.xlu0 %787
    %v789 = vrcp.pop %v779
    %v790 = vrcp.pop %v782
    %v791 = vrcp.pop %v785
    %v792 = vrcp.pop %v788
    %v793 = vmul.f32 %v770, %v789
    %v794 = vmul.f32 %v772, %v790
    %v795 = vmul.f32 %v774, %v791
    %v796 = vmul.f32 %v776, %v792
    %v797 = vpack.c.bf16 %v794, %v793
    %v798 = vpack.c.bf16 %v796, %v795
    %800 = vrot.lane.b32.xlu0 %v407, 120
    %v801 = vpop.permute.xlu0 %800
    %v804 = vsel %vm506, %v797, 0
    %806 = vmatprep.subr.bf16.mxu0 0
    %807 = vmatpush1.bf16.msra.mxu0 0
    %808 = vmatprep.subr.bf16.mxu0 0
    %809 = vmatpush1.bf16.msra.mxu0 0
    %810 = vmatprep.subr.bf16.mxu0 0
    %811 = vmatpush1.bf16.msra.mxu0 0
    %812 = vmatprep.subr.bf16.mxu0 0
    %813 = vmatpush1.bf16.msra.mxu0 0
    %814 = vmatprep.subr.bf16.mxu0 0
    %815 = vmatpush1.bf16.msra.mxu0 0
    %816 = vmatprep.subr.bf16.mxu0 0
    %817 = vmatpush1.bf16.msra.mxu0 0
    %818 = vmatprep.subr.bf16.mxu0 0
    %819 = vmatpush1.bf16.msra.mxu0 0
    %820 = vmatprep.subr.bf16.mxu0 0
    %821 = vmatpush1.bf16.msra.mxu0 %v801
    %822 = vmatprep.subr.bf16.mxu0 0
    %823 = vmatpush2.bf16.msra.mxu0 0
    %824 = vmatprep.subr.bf16.mxu0 0
    %825 = vmatpush2.bf16.msra.mxu0 0
    %826 = vmatprep.subr.bf16.mxu0 0
    %827 = vmatpush2.bf16.msra.mxu0 0
    %828 = vmatprep.subr.bf16.mxu0 0
    %829 = vmatpush2.bf16.msra.mxu0 0
    %830 = vmatprep.subr.bf16.mxu0 0
    %831 = vmatpush2.bf16.msra.mxu0 0
    %832 = vmatprep.subr.bf16.mxu0 0
    %833 = vmatpush2.bf16.msra.mxu0 0
    %834 = vmatprep.subr.bf16.mxu0 0
    %835 = vmatpush2.bf16.msra.mxu0 0
    %836 = vmatprep.subr.bf16.mxu0 0
    %837 = vmatpush2.bf16.msra.mxu0 0
    %838 = vmatprep.mubr.bf16.mxu0 0
    %839 = vmatmul.mubr.bf16.gmra.mxu0 %v804
    %v840 = vpop.f32.mrf.mxu0
    %v841 = vadd.f32 0.0, %v840
    %v842 = vpop.f32.mrf.mxu0
    %v843 = vpop.f32.mrf.mxu0
    %v844 = vadd.f32 0.0, %v843
    %v845 = vpop.f32.mrf.mxu0
    %846 = vdwg.mxu0
    %848 = vrot.lane.b32.xlu0 %v408, 120
    %v849 = vpop.permute.xlu0 %848
    %v852 = vsel %vm506, %v798, 0
    %854 = vmatprep.subr.bf16.mxu0 0
    %855 = vmatpush1.bf16.msra.mxu0 0
    %856 = vmatprep.subr.bf16.mxu0 0
    %857 = vmatpush1.bf16.msra.mxu0 0
    %858 = vmatprep.subr.bf16.mxu0 0
    %859 = vmatpush1.bf16.msra.mxu0 0
    %860 = vmatprep.subr.bf16.mxu0 0
    %861 = vmatpush1.bf16.msra.mxu0 0
    %862 = vmatprep.subr.bf16.mxu0 0
    %863 = vmatpush1.bf16.msra.mxu0 0
    %864 = vmatprep.subr.bf16.mxu0 0
    %865 = vmatpush1.bf16.msra.mxu0 0
    %866 = vmatprep.subr.bf16.mxu0 0
    %867 = vmatpush1.bf16.msra.mxu0 0
    %868 = vmatprep.subr.bf16.mxu0 0
    %869 = vmatpush1.bf16.msra.mxu0 %v849
    %870 = vmatprep.subr.bf16.mxu0 0
    %871 = vmatpush2.bf16.msra.mxu0 0
    %872 = vmatprep.subr.bf16.mxu0 0
    %873 = vmatpush2.bf16.msra.mxu0 0
    %874 = vmatprep.subr.bf16.mxu0 0
    %875 = vmatpush2.bf16.msra.mxu0 0
    %876 = vmatprep.subr.bf16.mxu0 0
    %877 = vmatpush2.bf16.msra.mxu0 0
    %878 = vmatprep.subr.bf16.mxu0 0
    %879 = vmatpush2.bf16.msra.mxu0 0
    %880 = vmatprep.subr.bf16.mxu0 0
    %881 = vmatpush2.bf16.msra.mxu0 0
    %882 = vmatprep.subr.bf16.mxu0 0
    %883 = vmatpush2.bf16.msra.mxu0 0
    %884 = vmatprep.subr.bf16.mxu0 0
    %885 = vmatpush2.bf16.msra.mxu0 0
    %886 = vmatprep.mubr.bf16.mxu0 0
    %887 = vmatmul.mubr.bf16.gmra.mxu0 %v852
    %v888 = vpop.f32.mrf.mxu0
    %v889 = vadd.f32 0.0, %v888
    %v890 = vpop.f32.mrf.mxu0
    %v891 = vpop.f32.mrf.mxu0
    %v892 = vadd.f32 0.0, %v891
    %v893 = vpop.f32.mrf.mxu0
    %894 = vdwg.mxu0
    %v895 = vpack.c.bf16 %v844, %v841
    %v896 = vpack.c.bf16 %v892, %v889
    %s897 = scalar_lea.vmem [#allocation8], 4
    %v898 = vld [vmem:[%s897] sm:$0xf]
    %v900 = vsel %vm411, %v895, 0
    %v903 = vsel %vm411, %v896, 0
    %vm905 = vcmask 1043456
    %v907 = vsel %vm905, %v898, 0
    %909 = vmatprep.subr.bf16.mxu0 0
    %910 = vmatpush1.bf16.msra.mxu0 0
    %911 = vmatprep.subr.bf16.mxu0 0
    %912 = vmatpush1.bf16.msra.mxu0 0
    %913 = vmatprep.subr.bf16.mxu0 0
    %914 = vmatpush1.bf16.msra.mxu0 0
    %915 = vmatprep.subr.bf16.mxu0 0
    %916 = vmatpush1.bf16.msra.mxu0 0
    %917 = vmatprep.subr.bf16.mxu0 0
    %918 = vmatpush1.bf16.msra.mxu0 0
    %919 = vmatprep.subr.bf16.mxu0 0
    %920 = vmatpush1.bf16.msra.mxu0 0
    %921 = vmatprep.subr.bf16.mxu0 0
    %922 = vmatpush1.bf16.msra.mxu0 0
    %923 = vmatprep.subr.bf16.mxu0 0
    %924 = vmatpush1.bf16.msra.mxu0 %v907
    %925 = vmatprep.subr.bf16.mxu0 0
    %926 = vmatpush2.bf16.msra.mxu0 0
    %927 = vmatprep.subr.bf16.mxu0 0
    %928 = vmatpush2.bf16.msra.mxu0 0
    %929 = vmatprep.subr.bf16.mxu0 0
    %930 = vmatpush2.bf16.msra.mxu0 0
    %931 = vmatprep.subr.bf16.mxu0 0
    %932 = vmatpush2.bf16.msra.mxu0 0
    %933 = vmatprep.subr.bf16.mxu0 0
    %934 = vmatpush2.bf16.msra.mxu0 0
    %935 = vmatprep.subr.bf16.mxu0 0
    %936 = vmatpush2.bf16.msra.mxu0 0
    %937 = vmatprep.subr.bf16.mxu0 0
    %938 = vmatpush2.bf16.msra.mxu0 0
    %939 = vmatprep.subr.bf16.mxu0 0
    %940 = vmatpush2.bf16.msra.mxu0 0
    %941 = vmatprep.mubr.bf16.mxu0 0
    %942 = vmatmul.mubr.bf16.gmra.mxu0 %v900
    %v943 = vpop.f32.mrf.mxu0
    %v944 = vadd.f32 0.0, %v943
    %v945 = vpop.f32.mrf.mxu0
    %v946 = vpop.f32.mrf.mxu0
    %v947 = vadd.f32 0.0, %v946
    %v948 = vpop.f32.mrf.mxu0
    %949 = vmatprep.mubr.bf16.mxu0 0
    %950 = vmatmul.mubr.bf16.gmra.mxu0 %v903
    %v951 = vpop.f32.mrf.mxu0
    %v952 = vadd.f32 0.0, %v951
    %v953 = vpop.f32.mrf.mxu0
    %v954 = vpop.f32.mrf.mxu0
    %v955 = vadd.f32 0.0, %v954
    %v956 = vpop.f32.mrf.mxu0
    %957 = vdwg.mxu0
    %v959 = vsel %vm411, %v641, 0
    %v962 = vsel %vm411, %v642, 0
    %v965 = vsel %vm905, %v643, 0
    %967 = vmatprep.subr.bf16.mxu0 0
    %968 = vmatpush1.bf16.msra.mxu0 0
    %969 = vmatprep.subr.bf16.mxu0 0
    %970 = vmatpush1.bf16.msra.mxu0 0
    %971 = vmatprep.subr.bf16.mxu0 0
    %972 = vmatpush1.bf16.msra.mxu0 0
    %973 = vmatprep.subr.bf16.mxu0 0
    %974 = vmatpush1.bf16.msra.mxu0 0
    %975 = vmatprep.subr.bf16.mxu0 0
    %976 = vmatpush1.bf16.msra.mxu0 0
    %977 = vmatprep.subr.bf16.mxu0 0
    %978 = vmatpush1.bf16.msra.mxu0 0
    %979 = vmatprep.subr.bf16.mxu0 0
    %980 = vmatpush1.bf16.msra.mxu0 0
    %981 = vmatprep.subr.bf16.mxu0 0
    %982 = vmatpush1.bf16.msra.mxu0 %v965
    %983 = vmatprep.subr.bf16.mxu0 0
    %984 = vmatpush2.bf16.msra.mxu0 0
    %985 = vmatprep.subr.bf16.mxu0 0
    %986 = vmatpush2.bf16.msra.mxu0 0
    %987 = vmatprep.subr.bf16.mxu0 0
    %988 = vmatpush2.bf16.msra.mxu0 0
    %989 = vmatprep.subr.bf16.mxu0 0
    %990 = vmatpush2.bf16.msra.mxu0 0
    %991 = vmatprep.subr.bf16.mxu0 0
    %992 = vmatpush2.bf16.msra.mxu0 0
    %993 = vmatprep.subr.bf16.mxu0 0
    %994 = vmatpush2.bf16.msra.mxu0 0
    %995 = vmatprep.subr.bf16.mxu0 0
    %996 = vmatpush2.bf16.msra.mxu0 0
    %997 = vmatprep.subr.bf16.mxu0 0
    %998 = vmatpush2.bf16.msra.mxu0 0
    %999 = vmatprep.mubr.bf16.mxu0 0
    %1000 = vmatmul.mubr.bf16.gmra.mxu0 %v959
    %v1001 = vpop.f32.mrf.mxu0
    %v1002 = vadd.f32 %v944, %v1001
    %v1003 = vpop.f32.mrf.mxu0
    %v1004 = vpop.f32.mrf.mxu0
    %v1005 = vadd.f32 %v947, %v1004
    %v1006 = vpop.f32.mrf.mxu0
    %1007 = vmatprep.mubr.bf16.mxu0 0
    %1008 = vmatmul.mubr.bf16.gmra.mxu0 %v962
    %v1009 = vpop.f32.mrf.mxu0
    %v1010 = vadd.f32 %v952, %v1009
    %v1011 = vpop.f32.mrf.mxu0
    %v1012 = vpop.f32.mrf.mxu0
    %v1013 = vadd.f32 %v955, %v1012
    %v1014 = vpop.f32.mrf.mxu0
    %1015 = vdwg.mxu0
    %s1016 = scalar_lea.vmem %s8, 32
    %v1017 = vld [vmem:[%s1016] sm:$0xff]
    %v1018 = vld [vmem:[%s1016 + $0x8] sm:$0xff]
    %1019 = vrot.lane.b32.xlu0 %v403, 112
    %v1020 = vpop.permute.xlu0 %1019
    %1021 = vrot.lane.b32.xlu0 %v405, 112
    %v1022 = vpop.permute.xlu0 %1021
    %v1024 = vsel %vm411, %v1020, 0
    %v1027 = vsel %vm411, %v1022, 0
    %1029 = vmatprep.subr.bf16.mxu0 0
    %1030 = vmatpush1.bf16.xpose.msra.mxu0 0
    %1031 = vmatprep.subr.bf16.mxu0 0
    %1032 = vmatpush1.bf16.xpose.msra.mxu0 0
    %1033 = vmatprep.subr.bf16.mxu0 0
    %1034 = vmatpush1.bf16.xpose.msra.mxu0 0
    %1035 = vmatprep.subr.bf16.mxu0 0
    %1036 = vmatpush1.bf16.xpose.msra.mxu0 0
    %1037 = vmatprep.subr.bf16.mxu0 0
    %1038 = vmatpush1.bf16.xpose.msra.mxu0 0
    %1039 = vmatprep.subr.bf16.mxu0 0
    %1040 = vmatpush1.bf16.xpose.msra.mxu0 0
    %1041 = vmatprep.subr.bf16.mxu0 0
    %1042 = vmatpush1.bf16.xpose.msra.mxu0 0
    %1043 = vmatprep.subr.bf16.mxu0 0
    %1044 = vmatpush1.bf16.xpose.msra.mxu0 %v1027
    %1045 = vmatprep.subr.bf16.mxu0 0
    %1046 = vmatpush2.bf16.xpose.msra.mxu0 0
    %1047 = vmatprep.subr.bf16.mxu0 0
    %1048 = vmatpush2.bf16.xpose.msra.mxu0 0
    %1049 = vmatprep.subr.bf16.mxu0 0
    %1050 = vmatpush2.bf16.xpose.msra.mxu0 0
    %1051 = vmatprep.subr.bf16.mxu0 0
    %1052 = vmatpush2.bf16.xpose.msra.mxu0 0
    %1053 = vmatprep.subr.bf16.mxu0 0
    %1054 = vmatpush2.bf16.xpose.msra.mxu0 0
    %1055 = vmatprep.subr.bf16.mxu0 0
    %1056 = vmatpush2.bf16.xpose.msra.mxu0 0
    %1057 = vmatprep.subr.bf16.mxu0 0
    %1058 = vmatpush2.bf16.xpose.msra.mxu0 0
    %1059 = vmatprep.subr.bf16.mxu0 0
    %1060 = vmatpush2.bf16.xpose.msra.mxu0 0
    %1061 = vmatprep.mubr.bf16.mxu0 0
    %1062 = vmatmul.mubr.bf16.gmra.mxu0 %v1024
    %v1063 = vpop.f32.mrf.mxu0
    %v1064 = vadd.f32 %v1017, %v1063
    %v1065 = vpop.f32.mrf.mxu0
    %v1066 = vpop.f32.mrf.mxu0
    %v1067 = vadd.f32 %v1018, %v1066
    %v1068 = vpop.f32.mrf.mxu0
    %1069 = vdwg.mxu0
    %1070 = vrot.lane.b32.xlu0 %v404, 112
    %v1071 = vpop.permute.xlu0 %1070
    %1072 = vrot.lane.b32.xlu0 %v406, 112
    %v1073 = vpop.permute.xlu0 %1072
    %v1075 = vsel %vm411, %v1071, 0
    %v1078 = vsel %vm411, %v1073, 0
    %1080 = vmatprep.subr.bf16.mxu0 0
    %1081 = vmatpush1.bf16.xpose.msra.mxu0 0
    %1082 = vmatprep.subr.bf16.mxu0 0
    %1083 = vmatpush1.bf16.xpose.msra.mxu0 0
    %1084 = vmatprep.subr.bf16.mxu0 0
    %1085 = vmatpush1.bf16.xpose.msra.mxu0 0
    %1086 = vmatprep.subr.bf16.mxu0 0
    %1087 = vmatpush1.bf16.xpose.msra.mxu0 0
    %1088 = vmatprep.subr.bf16.mxu0 0
    %1089 = vmatpush1.bf16.xpose.msra.mxu0 0
    %1090 = vmatprep.subr.bf16.mxu0 0
    %1091 = vmatpush1.bf16.xpose.msra.mxu0 0
    %1092 = vmatprep.subr.bf16.mxu0 0
    %1093 = vmatpush1.bf16.xpose.msra.mxu0 0
    %1094 = vmatprep.subr.bf16.mxu0 0
    %1095 = vmatpush1.bf16.xpose.msra.mxu0 %v1078
    %1096 = vmatprep.subr.bf16.mxu0 0
    %1097 = vmatpush2.bf16.xpose.msra.mxu0 0
    %1098 = vmatprep.subr.bf16.mxu0 0
    %1099 = vmatpush2.bf16.xpose.msra.mxu0 0
    %1100 = vmatprep.subr.bf16.mxu0 0
    %1101 = vmatpush2.bf16.xpose.msra.mxu0 0
    %1102 = vmatprep.subr.bf16.mxu0 0
    %1103 = vmatpush2.bf16.xpose.msra.mxu0 0
    %1104 = vmatprep.subr.bf16.mxu0 0
    %1105 = vmatpush2.bf16.xpose.msra.mxu0 0
    %1106 = vmatprep.subr.bf16.mxu0 0
    %1107 = vmatpush2.bf16.xpose.msra.mxu0 0
    %1108 = vmatprep.subr.bf16.mxu0 0
    %1109 = vmatpush2.bf16.xpose.msra.mxu0 0
    %1110 = vmatprep.subr.bf16.mxu0 0
    %1111 = vmatpush2.bf16.xpose.msra.mxu0 0
    %1112 = vmatprep.mubr.bf16.mxu0 0
    %1113 = vmatmul.mubr.bf16.gmra.mxu0 %v1075
    %v1114 = vpop.f32.mrf.mxu0
    %v1115 = vadd.f32 %v1017, %v1114
    %v1116 = vpop.f32.mrf.mxu0
    %v1117 = vpop.f32.mrf.mxu0
    %v1118 = vadd.f32 %v1018, %v1117
    %v1119 = vpop.f32.mrf.mxu0
    %1120 = vdwg.mxu0
    %v1121 = vsel %vm506, %v1064, -inf
    %1122 = vmax.xlane.f32.xlu0 %v1121
    %v1123 = vpop.xlane.xlu0 %1122
    %v1124 = vsel %vm506, %v1067, -inf
    %1125 = vmax.xlane.f32.xlu0 %v1124
    %v1126 = vpop.xlane.xlu0 %1125
    %v1127 = vsel %vm506, %v1115, -inf
    %1128 = vmax.xlane.f32.xlu0 %v1127
    %v1129 = vpop.xlane.xlu0 %1128
    %v1130 = vsel %vm506, %v1118, -inf
    %1131 = vmax.xlane.f32.xlu0 %v1130
    %v1132 = vpop.xlane.xlu0 %1131
    %v1133 = vsub.f32 %v1064, %v1123
    %v1134 = vsub.f32 %v1067, %v1126
    %v1135 = vsub.f32 %v1115, %v1129
    %v1136 = vsub.f32 %v1118, %v1132
    %v1137 = vmul.f32 %v1133, 1.442695
    %v1138 = vpow.pop %v1137
    %v1139 = vmul.f32 %v1134, 1.442695
    %v1140 = vpow.pop %v1139
    %v1141 = vmul.f32 %v1135, 1.442695
    %v1142 = vpow.pop %v1141
    %v1143 = vmul.f32 %v1136, 1.442695
    %v1144 = vpow.pop %v1143
    %v1145 = vsel %vm506, %v1138, 0.0
    %1146 = vadd.xlane.f32.xlu0 %v1145
    %v1147 = vpop.xlane.xlu0 %1146
    %v1148 = vsel %vm506, %v1140, 0.0
    %1149 = vadd.xlane.f32.xlu0 %v1148
    %v1150 = vpop.xlane.xlu0 %1149
    %v1151 = vsel %vm506, %v1142, 0.0
    %1152 = vadd.xlane.f32.xlu0 %v1151
    %v1153 = vpop.xlane.xlu0 %1152
    %v1154 = vsel %vm506, %v1144, 0.0
    %1155 = vadd.xlane.f32.xlu0 %v1154
    %v1156 = vpop.xlane.xlu0 %1155
    %v1157 = vrcp.pop %v1147
    %v1158 = vrcp.pop %v1150
    %v1159 = vrcp.pop %v1153
    %v1160 = vrcp.pop %v1156
    %v1161 = vmul.f32 %v1138, %v1157
    %v1162 = vmul.f32 %v1140, %v1158
    %v1163 = vmul.f32 %v1142, %v1159
    %v1164 = vmul.f32 %v1144, %v1160
    %v1165 = vpack.c.bf16 %v1162, %v1161
    %v1166 = vpack.c.bf16 %v1164, %v1163
    %1167 = vrot.lane.b32.xlu0 %v407, 112
    %v1168 = vpop.permute.xlu0 %1167
    %v1171 = vsel %vm506, %v1165, 0
    %1173 = vmatprep.subr.bf16.mxu0 0
    %1174 = vmatpush1.bf16.msra.mxu0 0
    %1175 = vmatprep.subr.bf16.mxu0 0
    %1176 = vmatpush1.bf16.msra.mxu0 0
    %1177 = vmatprep.subr.bf16.mxu0 0
    %1178 = vmatpush1.bf16.msra.mxu0 0
    %1179 = vmatprep.subr.bf16.mxu0 0
    %1180 = vmatpush1.bf16.msra.mxu0 0
    %1181 = vmatprep.subr.bf16.mxu0 0
    %1182 = vmatpush1.bf16.msra.mxu0 0
    %1183 = vmatprep.subr.bf16.mxu0 0
    %1184 = vmatpush1.bf16.msra.mxu0 0
    %1185 = vmatprep.subr.bf16.mxu0 0
    %1186 = vmatpush1.bf16.msra.mxu0 0
    %1187 = vmatprep.subr.bf16.mxu0 0
    %1188 = vmatpush1.bf16.msra.mxu0 %v1168
    %1189 = vmatprep.subr.bf16.mxu0 0
    %1190 = vmatpush2.bf16.msra.mxu0 0
    %1191 = vmatprep.subr.bf16.mxu0 0
    %1192 = vmatpush2.bf16.msra.mxu0 0
    %1193 = vmatprep.subr.bf16.mxu0 0
    %1194 = vmatpush2.bf16.msra.mxu0 0
    %1195 = vmatprep.subr.bf16.mxu0 0
    %1196 = vmatpush2.bf16.msra.mxu0 0
    %1197 = vmatprep.subr.bf16.mxu0 0
    %1198 = vmatpush2.bf16.msra.mxu0 0
    %1199 = vmatprep.subr.bf16.mxu0 0
    %1200 = vmatpush2.bf16.msra.mxu0 0
    %1201 = vmatprep.subr.bf16.mxu0 0
    %1202 = vmatpush2.bf16.msra.mxu0 0
    %1203 = vmatprep.subr.bf16.mxu0 0
    %1204 = vmatpush2.bf16.msra.mxu0 0
    %1205 = vmatprep.mubr.bf16.mxu0 0
    %1206 = vmatmul.mubr.bf16.gmra.mxu0 %v1171
    %v1207 = vpop.f32.mrf.mxu0
    %v1208 = vadd.f32 0.0, %v1207
    %v1209 = vpop.f32.mrf.mxu0
    %v1210 = vpop.f32.mrf.mxu0
    %v1211 = vadd.f32 0.0, %v1210
    %v1212 = vpop.f32.mrf.mxu0
    %1213 = vdwg.mxu0
    %1214 = vrot.lane.b32.xlu0 %v408, 112
    %v1215 = vpop.permute.xlu0 %1214
    %v1218 = vsel %vm506, %v1166, 0
    %1220 = vmatprep.subr.bf16.mxu0 0
    %1221 = vmatpush1.bf16.msra.mxu0 0
    %1222 = vmatprep.subr.bf16.mxu0 0
    %1223 = vmatpush1.bf16.msra.mxu0 0
    %1224 = vmatprep.subr.bf16.mxu0 0
    %1225 = vmatpush1.bf16.msra.mxu0 0
    %1226 = vmatprep.subr.bf16.mxu0 0
    %1227 = vmatpush1.bf16.msra.mxu0 0
    %1228 = vmatprep.subr.bf16.mxu0 0
    %1229 = vmatpush1.bf16.msra.mxu0 0
    %1230 = vmatprep.subr.bf16.mxu0 0
    %1231 = vmatpush1.bf16.msra.mxu0 0
    %1232 = vmatprep.subr.bf16.mxu0 0
    %1233 = vmatpush1.bf16.msra.mxu0 0
    %1234 = vmatprep.subr.bf16.mxu0 0
    %1235 = vmatpush1.bf16.msra.mxu0 %v1215
    %1236 = vmatprep.subr.bf16.mxu0 0
    %1237 = vmatpush2.bf16.msra.mxu0 0
    %1238 = vmatprep.subr.bf16.mxu0 0
    %1239 = vmatpush2.bf16.msra.mxu0 0
    %1240 = vmatprep.subr.bf16.mxu0 0
    %1241 = vmatpush2.bf16.msra.mxu0 0
    %1242 = vmatprep.subr.bf16.mxu0 0
    %1243 = vmatpush2.bf16.msra.mxu0 0
    %1244 = vmatprep.subr.bf16.mxu0 0
    %1245 = vmatpush2.bf16.msra.mxu0 0
    %1246 = vmatprep.subr.bf16.mxu0 0
    %1247 = vmatpush2.bf16.msra.mxu0 0
    %1248 = vmatprep.subr.bf16.mxu0 0
    %1249 = vmatpush2.bf16.msra.mxu0 0
    %1250 = vmatprep.subr.bf16.mxu0 0
    %1251 = vmatpush2.bf16.msra.mxu0 0
    %1252 = vmatprep.mubr.bf16.mxu0 0
    %1253 = vmatmul.mubr.bf16.gmra.mxu0 %v1218
    %v1254 = vpop.f32.mrf.mxu0
    %v1255 = vadd.f32 0.0, %v1254
    %v1256 = vpop.f32.mrf.mxu0
    %v1257 = vpop.f32.mrf.mxu0
    %v1258 = vadd.f32 0.0, %v1257
    %v1259 = vpop.f32.mrf.mxu0
    %1260 = vdwg.mxu0
    %v1261 = vpack.c.bf16 %v1211, %v1208
    %v1262 = vpack.c.bf16 %v1258, %v1255
    %s1263 = scalar_lea.vmem [#allocation8], 8
    %v1264 = vld [vmem:[%s1263] sm:$0xf]
    %v1266 = vsel %vm411, %v1261, 0
    %v1269 = vsel %vm411, %v1262, 0
    %v1272 = vsel %vm905, %v1264, 0
    %1274 = vmatprep.subr.bf16.mxu0 0
    %1275 = vmatpush1.bf16.msra.mxu0 0
    %1276 = vmatprep.subr.bf16.mxu0 0
    %1277 = vmatpush1.bf16.msra.mxu0 0
    %1278 = vmatprep.subr.bf16.mxu0 0
    %1279 = vmatpush1.bf16.msra.mxu0 0
    %1280 = vmatprep.subr.bf16.mxu0 0
    %1281 = vmatpush1.bf16.msra.mxu0 0
    %1282 = vmatprep.subr.bf16.mxu0 0
    %1283 = vmatpush1.bf16.msra.mxu0 0
    %1284 = vmatprep.subr.bf16.mxu0 0
    %1285 = vmatpush1.bf16.msra.mxu0 0
    %1286 = vmatprep.subr.bf16.mxu0 0
    %1287 = vmatpush1.bf16.msra.mxu0 0
    %1288 = vmatprep.subr.bf16.mxu0 0
    %1289 = vmatpush1.bf16.msra.mxu0 %v1272
    %1290 = vmatprep.subr.bf16.mxu0 0
    %1291 = vmatpush2.bf16.msra.mxu0 0
    %1292 = vmatprep.subr.bf16.mxu0 0
    %1293 = vmatpush2.bf16.msra.mxu0 0
    %1294 = vmatprep.subr.bf16.mxu0 0
    %1295 = vmatpush2.bf16.msra.mxu0 0
    %1296 = vmatprep.subr.bf16.mxu0 0
    %1297 = vmatpush2.bf16.msra.mxu0 0
    %1298 = vmatprep.subr.bf16.mxu0 0
    %1299 = vmatpush2.bf16.msra.mxu0 0
    %1300 = vmatprep.subr.bf16.mxu0 0
    %1301 = vmatpush2.bf16.msra.mxu0 0
    %1302 = vmatprep.subr.bf16.mxu0 0
    %1303 = vmatpush2.bf16.msra.mxu0 0
    %1304 = vmatprep.subr.bf16.mxu0 0
    %1305 = vmatpush2.bf16.msra.mxu0 0
    %1306 = vmatprep.mubr.bf16.mxu0 0
    %1307 = vmatmul.mubr.bf16.gmra.mxu0 %v1266
    %v1308 = vpop.f32.mrf.mxu0
    %v1309 = vadd.f32 0.0, %v1308
    %v1310 = vpop.f32.mrf.mxu0
    %v1311 = vpop.f32.mrf.mxu0
    %v1312 = vadd.f32 0.0, %v1311
    %v1313 = vpop.f32.mrf.mxu0
    %1314 = vmatprep.mubr.bf16.mxu0 0
    %1315 = vmatmul.mubr.bf16.gmra.mxu0 %v1269
    %v1316 = vpop.f32.mrf.mxu0
    %v1317 = vadd.f32 0.0, %v1316
    %v1318 = vpop.f32.mrf.mxu0
    %v1319 = vpop.f32.mrf.mxu0
    %v1320 = vadd.f32 0.0, %v1319
    %v1321 = vpop.f32.mrf.mxu0
    %1322 = vdwg.mxu0
    %v1323 = vadd.f32 %v1002, %v1309
    %v1324 = vadd.f32 %v1005, %v1312
    %v1325 = vadd.f32 %v1010, %v1317
    %v1326 = vadd.f32 %v1013, %v1320
    %s1327 = scalar_lea.vmem %s8, 48
    %v1328 = vld [vmem:[%s1327] sm:$0xff]
    %v1329 = vld [vmem:[%s1327 + $0x8] sm:$0xff]
    %1330 = vrot.lane.b32.xlu0 %v403, 104
    %v1331 = vpop.permute.xlu0 %1330
    %1332 = vrot.lane.b32.xlu0 %v405, 104
    %v1333 = vpop.permute.xlu0 %1332
    %v1335 = vsel %vm411, %v1331, 0
    %v1338 = vsel %vm411, %v1333, 0
    %1340 = vmatprep.subr.bf16.mxu0 0
    %1341 = vmatpush1.bf16.xpose.msra.mxu0 0
    %1342 = vmatprep.subr.bf16.mxu0 0
    %1343 = vmatpush1.bf16.xpose.msra.mxu0 0
    %1344 = vmatprep.subr.bf16.mxu0 0
    %1345 = vmatpush1.bf16.xpose.msra.mxu0 0
    %1346 = vmatprep.subr.bf16.mxu0 0
    %1347 = vmatpush1.bf16.xpose.msra.mxu0 0
    %1348 = vmatprep.subr.bf16.mxu0 0
    %1349 = vmatpush1.bf16.xpose.msra.mxu0 0
    %1350 = vmatprep.subr.bf16.mxu0 0
    %1351 = vmatpush1.bf16.xpose.msra.mxu0 0
    %1352 = vmatprep.subr.bf16.mxu0 0
    %1353 = vmatpush1.bf16.xpose.msra.mxu0 0
    %1354 = vmatprep.subr.bf16.mxu0 0
    %1355 = vmatpush1.bf16.xpose.msra.mxu0 %v1338
    %1356 = vmatprep.subr.bf16.mxu0 0
    %1357 = vmatpush2.bf16.xpose.msra.mxu0 0
    %1358 = vmatprep.subr.bf16.mxu0 0
    %1359 = vmatpush2.bf16.xpose.msra.mxu0 0
    %1360 = vmatprep.subr.bf16.mxu0 0
    %1361 = vmatpush2.bf16.xpose.msra.mxu0 0
    %1362 = vmatprep.subr.bf16.mxu0 0
    %1363 = vmatpush2.bf16.xpose.msra.mxu0 0
    %1364 = vmatprep.subr.bf16.mxu0 0
    %1365 = vmatpush2.bf16.xpose.msra.mxu0 0
    %1366 = vmatprep.subr.bf16.mxu0 0
    %1367 = vmatpush2.bf16.xpose.msra.mxu0 0
    %1368 = vmatprep.subr.bf16.mxu0 0
    %1369 = vmatpush2.bf16.xpose.msra.mxu0 0
    %1370 = vmatprep.subr.bf16.mxu0 0
    %1371 = vmatpush2.bf16.xpose.msra.mxu0 0
    %1372 = vmatprep.mubr.bf16.mxu0 0
    %1373 = vmatmul.mubr.bf16.gmra.mxu0 %v1335
    %v1374 = vpop.f32.mrf.mxu0
    %v1375 = vadd.f32 %v1328, %v1374
    %v1376 = vpop.f32.mrf.mxu0
    %v1377 = vpop.f32.mrf.mxu0
    %v1378 = vadd.f32 %v1329, %v1377
    %v1379 = vpop.f32.mrf.mxu0
    %1380 = vdwg.mxu0
    %1381 = vrot.lane.b32.xlu0 %v404, 104
    %v1382 = vpop.permute.xlu0 %1381
    %1383 = vrot.lane.b32.xlu0 %v406, 104
    %v1384 = vpop.permute.xlu0 %1383
    %v1386 = vsel %vm411, %v1382, 0
    %v1389 = vsel %vm411, %v1384, 0
    %1391 = vmatprep.subr.bf16.mxu0 0
    %1392 = vmatpush1.bf16.xpose.msra.mxu0 0
    %1393 = vmatprep.subr.bf16.mxu0 0
    %1394 = vmatpush1.bf16.xpose.msra.mxu0 0
    %1395 = vmatprep.subr.bf16.mxu0 0
    %1396 = vmatpush1.bf16.xpose.msra.mxu0 0
    %1397 = vmatprep.subr.bf16.mxu0 0
    %1398 = vmatpush1.bf16.xpose.msra.mxu0 0
    %1399 = vmatprep.subr.bf16.mxu0 0
    %1400 = vmatpush1.bf16.xpose.msra.mxu0 0
    %1401 = vmatprep.subr.bf16.mxu0 0
    %1402 = vmatpush1.bf16.xpose.msra.mxu0 0
    %1403 = vmatprep.subr.bf16.mxu0 0
    %1404 = vmatpush1.bf16.xpose.msra.mxu0 0
    %1405 = vmatprep.subr.bf16.mxu0 0
    %1406 = vmatpush1.bf16.xpose.msra.mxu0 %v1389
    %1407 = vmatprep.subr.bf16.mxu0 0
    %1408 = vmatpush2.bf16.xpose.msra.mxu0 0
    %1409 = vmatprep.subr.bf16.mxu0 0
    %1410 = vmatpush2.bf16.xpose.msra.mxu0 0
    %1411 = vmatprep.subr.bf16.mxu0 0
    %1412 = vmatpush2.bf16.xpose.msra.mxu0 0
    %1413 = vmatprep.subr.bf16.mxu0 0
    %1414 = vmatpush2.bf16.xpose.msra.mxu0 0
    %1415 = vmatprep.subr.bf16.mxu0 0
    %1416 = vmatpush2.bf16.xpose.msra.mxu0 0
    %1417 = vmatprep.subr.bf16.mxu0 0
    %1418 = vmatpush2.bf16.xpose.msra.mxu0 0
    %1419 = vmatprep.subr.bf16.mxu0 0
    %1420 = vmatpush2.bf16.xpose.msra.mxu0 0
    %1421 = vmatprep.subr.bf16.mxu0 0
    %1422 = vmatpush2.bf16.xpose.msra.mxu0 0
    %1423 = vmatprep.mubr.bf16.mxu0 0
    %1424 = vmatmul.mubr.bf16.gmra.mxu0 %v1386
    %v1425 = vpop.f32.mrf.mxu0
    %v1426 = vadd.f32 %v1328, %v1425
    %v1427 = vpop.f32.mrf.mxu0
    %v1428 = vpop.f32.mrf.mxu0
    %v1429 = vadd.f32 %v1329, %v1428
    %v1430 = vpop.f32.mrf.mxu0
    %1431 = vdwg.mxu0
    %v1432 = vsel %vm506, %v1375, -inf
    %1433 = vmax.xlane.f32.xlu0 %v1432
    %v1434 = vpop.xlane.xlu0 %1433
    %v1435 = vsel %vm506, %v1378, -inf
    %1436 = vmax.xlane.f32.xlu0 %v1435
    %v1437 = vpop.xlane.xlu0 %1436
    %v1438 = vsel %vm506, %v1426, -inf
    %1439 = vmax.xlane.f32.xlu0 %v1438
    %v1440 = vpop.xlane.xlu0 %1439
    %v1441 = vsel %vm506, %v1429, -inf
    %1442 = vmax.xlane.f32.xlu0 %v1441
    %v1443 = vpop.xlane.xlu0 %1442
    %v1444 = vsub.f32 %v1375, %v1434
    %v1445 = vsub.f32 %v1378, %v1437
    %v1446 = vsub.f32 %v1426, %v1440
    %v1447 = vsub.f32 %v1429, %v1443
    %v1448 = vmul.f32 %v1444, 1.442695
    %v1449 = vpow.pop %v1448
    %v1450 = vmul.f32 %v1445, 1.442695
    %v1451 = vpow.pop %v1450
    %v1452 = vmul.f32 %v1446, 1.442695
    %v1453 = vpow.pop %v1452
    %v1454 = vmul.f32 %v1447, 1.442695
    %v1455 = vpow.pop %v1454
    %v1456 = vsel %vm506, %v1449, 0.0
    %1457 = vadd.xlane.f32.xlu0 %v1456
    %v1458 = vpop.xlane.xlu0 %1457
    %v1459 = vsel %vm506, %v1451, 0.0
    %1460 = vadd.xlane.f32.xlu0 %v1459
    %v1461 = vpop.xlane.xlu0 %1460
    %v1462 = vsel %vm506, %v1453, 0.0
    %1463 = vadd.xlane.f32.xlu0 %v1462
    %v1464 = vpop.xlane.xlu0 %1463
    %v1465 = vsel %vm506, %v1455, 0.0
    %1466 = vadd.xlane.f32.xlu0 %v1465
    %v1467 = vpop.xlane.xlu0 %1466
    %v1468 = vrcp.pop %v1458
    %v1469 = vrcp.pop %v1461
    %v1470 = vrcp.pop %v1464
    %v1471 = vrcp.pop %v1467
    %v1472 = vmul.f32 %v1449, %v1468
    %v1473 = vmul.f32 %v1451, %v1469
    %v1474 = vmul.f32 %v1453, %v1470
    %v1475 = vmul.f32 %v1455, %v1471
    %v1476 = vpack.c.bf16 %v1473, %v1472
    %v1477 = vpack.c.bf16 %v1475, %v1474
    %1478 = vrot.lane.b32.xlu0 %v407, 104
    %v1479 = vpop.permute.xlu0 %1478
    %v1482 = vsel %vm506, %v1476, 0
    %1484 = vmatprep.subr.bf16.mxu0 0
    %1485 = vmatpush1.bf16.msra.mxu0 0
    %1486 = vmatprep.subr.bf16.mxu0 0
    %1487 = vmatpush1.bf16.msra.mxu0 0
    %1488 = vmatprep.subr.bf16.mxu0 0
    %1489 = vmatpush1.bf16.msra.mxu0 0
    %1490 = vmatprep.subr.bf16.mxu0 0
    %1491 = vmatpush1.bf16.msra.mxu0 0
    %1492 = vmatprep.subr.bf16.mxu0 0
    %1493 = vmatpush1.bf16.msra.mxu0 0
    %1494 = vmatprep.subr.bf16.mxu0 0
    %1495 = vmatpush1.bf16.msra.mxu0 0
    %1496 = vmatprep.subr.bf16.mxu0 0
    %1497 = vmatpush1.bf16.msra.mxu0 0
    %1498 = vmatprep.subr.bf16.mxu0 0
    %1499 = vmatpush1.bf16.msra.mxu0 %v1479
    %1500 = vmatprep.subr.bf16.mxu0 0
    %1501 = vmatpush2.bf16.msra.mxu0 0
    %1502 = vmatprep.subr.bf16.mxu0 0
    %1503 = vmatpush2.bf16.msra.mxu0 0
    %1504 = vmatprep.subr.bf16.mxu0 0
    %1505 = vmatpush2.bf16.msra.mxu0 0
    %1506 = vmatprep.subr.bf16.mxu0 0
    %1507 = vmatpush2.bf16.msra.mxu0 0
    %1508 = vmatprep.subr.bf16.mxu0 0
    %1509 = vmatpush2.bf16.msra.mxu0 0
    %1510 = vmatprep.subr.bf16.mxu0 0
    %1511 = vmatpush2.bf16.msra.mxu0 0
    %1512 = vmatprep.subr.bf16.mxu0 0
    %1513 = vmatpush2.bf16.msra.mxu0 0
    %1514 = vmatprep.subr.bf16.mxu0 0
    %1515 = vmatpush2.bf16.msra.mxu0 0
    %1516 = vmatprep.mubr.bf16.mxu0 0
    %1517 = vmatmul.mubr.bf16.gmra.mxu0 %v1482
    %v1518 = vpop.f32.mrf.mxu0
    %v1519 = vadd.f32 0.0, %v1518
    %v1520 = vpop.f32.mrf.mxu0
    %v1521 = vpop.f32.mrf.mxu0
    %v1522 = vadd.f32 0.0, %v1521
    %v1523 = vpop.f32.mrf.mxu0
    %1524 = vdwg.mxu0
    %1525 = vrot.lane.b32.xlu0 %v408, 104
    %v1526 = vpop.permute.xlu0 %1525
    %v1529 = vsel %vm506, %v1477, 0
    %1531 = vmatprep.subr.bf16.mxu0 0
    %1532 = vmatpush1.bf16.msra.mxu0 0
    %1533 = vmatprep.subr.bf16.mxu0 0
    %1534 = vmatpush1.bf16.msra.mxu0 0
    %1535 = vmatprep.subr.bf16.mxu0 0
    %1536 = vmatpush1.bf16.msra.mxu0 0
    %1537 = vmatprep.subr.bf16.mxu0 0
    %1538 = vmatpush1.bf16.msra.mxu0 0
    %1539 = vmatprep.subr.bf16.mxu0 0
    %1540 = vmatpush1.bf16.msra.mxu0 0
    %1541 = vmatprep.subr.bf16.mxu0 0
    %1542 = vmatpush1.bf16.msra.mxu0 0
    %1543 = vmatprep.subr.bf16.mxu0 0
    %1544 = vmatpush1.bf16.msra.mxu0 0
    %1545 = vmatprep.subr.bf16.mxu0 0
    %1546 = vmatpush1.bf16.msra.mxu0 %v1526
    %1547 = vmatprep.subr.bf16.mxu0 0
    %1548 = vmatpush2.bf16.msra.mxu0 0
    %1549 = vmatprep.subr.bf16.mxu0 0
    %1550 = vmatpush2.bf16.msra.mxu0 0
    %1551 = vmatprep.subr.bf16.mxu0 0
    %1552 = vmatpush2.bf16.msra.mxu0 0
    %1553 = vmatprep.subr.bf16.mxu0 0
    %1554 = vmatpush2.bf16.msra.mxu0 0
    %1555 = vmatprep.subr.bf16.mxu0 0
    %1556 = vmatpush2.bf16.msra.mxu0 0
    %1557 = vmatprep.subr.bf16.mxu0 0
    %1558 = vmatpush2.bf16.msra.mxu0 0
    %1559 = vmatprep.subr.bf16.mxu0 0
    %1560 = vmatpush2.bf16.msra.mxu0 0
    %1561 = vmatprep.subr.bf16.mxu0 0
    %1562 = vmatpush2.bf16.msra.mxu0 0
    %1563 = vmatprep.mubr.bf16.mxu0 0
    %1564 = vmatmul.mubr.bf16.gmra.mxu0 %v1529
    %v1565 = vpop.f32.mrf.mxu0
    %v1566 = vadd.f32 0.0, %v1565
    %v1567 = vpop.f32.mrf.mxu0
    %v1568 = vpop.f32.mrf.mxu0
    %v1569 = vadd.f32 0.0, %v1568
    %v1570 = vpop.f32.mrf.mxu0
    %1571 = vdwg.mxu0
    %v1572 = vpack.c.bf16 %v1522, %v1519
    %v1573 = vpack.c.bf16 %v1569, %v1566
    %s1574 = scalar_lea.vmem [#allocation8], 12
    %v1575 = vld [vmem:[%s1574] sm:$0xf]
    %v1577 = vsel %vm411, %v1572, 0
    %v1580 = vsel %vm411, %v1573, 0
    %v1583 = vsel %vm905, %v1575, 0
    %1585 = vmatprep.subr.bf16.mxu0 0
    %1586 = vmatpush1.bf16.msra.mxu0 0
    %1587 = vmatprep.subr.bf16.mxu0 0
    %1588 = vmatpush1.bf16.msra.mxu0 0
    %1589 = vmatprep.subr.bf16.mxu0 0
    %1590 = vmatpush1.bf16.msra.mxu0 0
    %1591 = vmatprep.subr.bf16.mxu0 0
    %1592 = vmatpush1.bf16.msra.mxu0 0
    %1593 = vmatprep.subr.bf16.mxu0 0
    %1594 = vmatpush1.bf16.msra.mxu0 0
    %1595 = vmatprep.subr.bf16.mxu0 0
    %1596 = vmatpush1.bf16.msra.mxu0 0
    %1597 = vmatprep.subr.bf16.mxu0 0
    %1598 = vmatpush1.bf16.msra.mxu0 0
    %1599 = vmatprep.subr.bf16.mxu0 0
    %1600 = vmatpush1.bf16.msra.mxu0 %v1583
    %1601 = vmatprep.subr.bf16.mxu0 0
    %1602 = vmatpush2.bf16.msra.mxu0 0
    %1603 = vmatprep.subr.bf16.mxu0 0
    %1604 = vmatpush2.bf16.msra.mxu0 0
    %1605 = vmatprep.subr.bf16.mxu0 0
    %1606 = vmatpush2.bf16.msra.mxu0 0
    %1607 = vmatprep.subr.bf16.mxu0 0
    %1608 = vmatpush2.bf16.msra.mxu0 0
    %1609 = vmatprep.subr.bf16.mxu0 0
    %1610 = vmatpush2.bf16.msra.mxu0 0
    %1611 = vmatprep.subr.bf16.mxu0 0
    %1612 = vmatpush2.bf16.msra.mxu0 0
    %1613 = vmatprep.subr.bf16.mxu0 0
    %1614 = vmatpush2.bf16.msra.mxu0 0
    %1615 = vmatprep.subr.bf16.mxu0 0
    %1616 = vmatpush2.bf16.msra.mxu0 0
    %1617 = vmatprep.mubr.bf16.mxu0 0
    %1618 = vmatmul.mubr.bf16.gmra.mxu0 %v1577
    %v1619 = vpop.f32.mrf.mxu0
    %v1620 = vadd.f32 0.0, %v1619
    %v1621 = vpop.f32.mrf.mxu0
    %v1622 = vpop.f32.mrf.mxu0
    %v1623 = vadd.f32 0.0, %v1622
    %v1624 = vpop.f32.mrf.mxu0
    %1625 = vmatprep.mubr.bf16.mxu0 0
    %1626 = vmatmul.mubr.bf16.gmra.mxu0 %v1580
    %v1627 = vpop.f32.mrf.mxu0
    %v1628 = vadd.f32 0.0, %v1627
    %v1629 = vpop.f32.mrf.mxu0
    %v1630 = vpop.f32.mrf.mxu0
    %v1631 = vadd.f32 0.0, %v1630
    %v1632 = vpop.f32.mrf.mxu0
    %1633 = vdwg.mxu0
    %v1634 = vadd.f32 %v1323, %v1620
    %v1635 = vadd.f32 %v1324, %v1623
    %v1636 = vadd.f32 %v1325, %v1628
    %v1637 = vadd.f32 %v1326, %v1631
    %v1638 = vadd.f32 %v120, %v1634
    %v1639 = vadd.f32 %v121, %v1635
    %v1640 = vadd.f32 %v122, %v1636
    %v1641 = vadd.f32 %v123, %v1637
    %v1642 = vld [vmem:[%s7] sm:$0x1]
    %v1644 = vlaneseq
    %v1645 = vshrl.u32 %v1644, 7
    %v1646 = vsub.s32 0, %v1645
    %v1647 = vrot.slane %v1642, %v1646
    %v1649 = vadd.f32 %v1638, %v1647
    %v1650 = vadd.f32 %v1639, %v1647
    %v1651 = vadd.f32 %v1640, %v1647
    %v1652 = vadd.f32 %v1641, %v1647
    %v1653 = vld [vmem:[%s9] sm:$0x1]
    %v1654 = vld [vmem:[%s10] sm:$0x1]
    %v1655 = vsel %vm126, %v1649, 0.0
    %1656 = vadd.xlane.f32.xlu0 %v1655
    %v1657 = vpop.xlane.xlu0 %1656
    %v1658 = vsel %vm126, %v1650, 0.0
    %1659 = vadd.xlane.f32.xlu0 %v1658
    %v1660 = vpop.xlane.xlu0 %1659
    %v1661 = vsel %vm126, %v1651, 0.0
    %1662 = vadd.xlane.f32.xlu0 %v1661
    %v1663 = vpop.xlane.xlu0 %1662
    %v1664 = vsel %vm126, %v1652, 0.0
    %1665 = vadd.xlane.f32.xlu0 %v1664
    %v1666 = vpop.xlane.xlu0 %1665
    %v1667 = vmul.f32 %v1657, %v139
    %v1668 = vmul.f32 %v1660, %v139
    %v1669 = vmul.f32 %v1663, %v139
    %v1670 = vmul.f32 %v1666, %v139
    %v1671 = vsub.f32 %v1649, %v1667
    %v1672 = vsub.f32 %v1650, %v1668
    %v1673 = vsub.f32 %v1651, %v1669
    %v1674 = vsub.f32 %v1652, %v1670
    %v1675 = vmul.f32 %v1671, %v1671
    %v1676 = vmul.f32 %v1672, %v1672
    %v1677 = vmul.f32 %v1673, %v1673
    %v1678 = vmul.f32 %v1674, %v1674
    %v1679 = vsel %vm126, %v1675, 0.0
    %1680 = vadd.xlane.f32.xlu0 %v1679
    %v1681 = vpop.xlane.xlu0 %1680
    %v1682 = vsel %vm126, %v1676, 0.0
    %1683 = vadd.xlane.f32.xlu0 %v1682
    %v1684 = vpop.xlane.xlu0 %1683
    %v1685 = vsel %vm126, %v1677, 0.0
    %1686 = vadd.xlane.f32.xlu0 %v1685
    %v1687 = vpop.xlane.xlu0 %1686
    %v1688 = vsel %vm126, %v1678, 0.0
    %1689 = vadd.xlane.f32.xlu0 %v1688
    %v1690 = vpop.xlane.xlu0 %1689
    %v1691 = vmul.f32 %v1681, %v139
    %v1692 = vmul.f32 %v1684, %v139
    %v1693 = vmul.f32 %v1687, %v139
    %v1694 = vmul.f32 %v1690, %v139
    %v1695 = vadd.f32 %v1691, 1e-05
    %v1696 = vadd.f32 %v1692, 1e-05
    %v1697 = vadd.f32 %v1693, 1e-05
    %v1698 = vadd.f32 %v1694, 1e-05
    %v1699 = vrsqrt.pop %v1695
    %v1700 = vrsqrt.pop %v1696
    %v1701 = vrsqrt.pop %v1697
    %v1702 = vrsqrt.pop %v1698
    %v1703 = vmul.f32 %v1671, %v1699
    %v1704 = vmul.f32 %v1672, %v1700
    %v1705 = vmul.f32 %v1673, %v1701
    %v1706 = vmul.f32 %v1674, %v1702
    %v1708 = vlaneseq
    %v1709 = vshrl.u32 %v1708, 7
    %v1710 = vsub.s32 0, %v1709
    %v1711 = vrot.slane %v1653, %v1710
    %v1713 = vmul.f32 %v1703, %v1711
    %v1714 = vmul.f32 %v1704, %v1711
    %v1715 = vmul.f32 %v1705, %v1711
    %v1716 = vmul.f32 %v1706, %v1711
    %v1718 = vlaneseq
    %v1719 = vshrl.u32 %v1718, 7
    %v1720 = vsub.s32 0, %v1719
    %v1721 = vrot.slane %v1654, %v1720
    %v1723 = vadd.f32 %v1713, %v1721
    %v1724 = vadd.f32 %v1714, %v1721
    %v1725 = vadd.f32 %v1715, %v1721
    %v1726 = vadd.f32 %v1716, %v1721
    %v1727 = vpack.c.bf16 %v1724, %v1723
    %v1728 = vpack.c.bf16 %v1726, %v1725
    %v1729 = vld [vmem:[#allocation10] sm:$0xf]
    %v1730 = vld [vmem:[#allocation10 + $0x4] sm:$0xf]
    %v1731 = vld [vmem:[#allocation10 + $0x8] sm:$0xf]
    %v1732 = vld [vmem:[#allocation10 + $0xc] sm:$0xf]
    %v1733 = vld [vmem:[%s12] sm:$0x1]
    %v1735 = vlaneseq
    %v1736 = vshrl.u32 %v1735, 7
    %v1737 = vsub.s32 0, %v1736
    %v1738 = vrot.slane %v1733, %v1737
    %v1744 = vunpack.c.l.b16 %v1729
    %v1745 = vunpack.c.l.b16 %v1730
    %v1746 = vunpack.c.l.b16 %v1731
    %v1747 = vunpack.c.l.b16 %v1732
    %v1748 = vpack.c.b16 %v1745, %v1744
    %v1749 = vpack.c.b16 %v1747, %v1746
    %v1753 = vsel %vm126, %v1727, 0
    %v1756 = vsel %vm126, %v1728, 0
    %1758 = vmatprep.subr.bf16.mxu0 0
    %1759 = vmatpush1.bf16.msra.mxu0 0
    %1760 = vmatprep.subr.bf16.mxu0 0
    %1761 = vmatpush1.bf16.msra.mxu0 0
    %1762 = vmatprep.subr.bf16.mxu0 0
    %1763 = vmatpush1.bf16.msra.mxu0 0
    %1764 = vmatprep.subr.bf16.mxu0 0
    %1765 = vmatpush1.bf16.msra.mxu0 0
    %1766 = vmatprep.subr.bf16.mxu0 0
    %1767 = vmatpush1.bf16.msra.mxu0 0
    %1768 = vmatprep.subr.bf16.mxu0 0
    %1769 = vmatpush1.bf16.msra.mxu0 0
    %1770 = vmatprep.subr.bf16.mxu0 0
    %1771 = vmatpush1.bf16.msra.mxu0 %v1749
    %1772 = vmatprep.subr.bf16.mxu0 0
    %1773 = vmatpush1.bf16.msra.mxu0 %v1748
    %1774 = vmatprep.subr.bf16.mxu0 0
    %1775 = vmatpush2.bf16.msra.mxu0 0
    %1776 = vmatprep.subr.bf16.mxu0 0
    %1777 = vmatpush2.bf16.msra.mxu0 0
    %1778 = vmatprep.subr.bf16.mxu0 0
    %1779 = vmatpush2.bf16.msra.mxu0 0
    %1780 = vmatprep.subr.bf16.mxu0 0
    %1781 = vmatpush2.bf16.msra.mxu0 0
    %1782 = vmatprep.subr.bf16.mxu0 0
    %1783 = vmatpush2.bf16.msra.mxu0 0
    %1784 = vmatprep.subr.bf16.mxu0 0
    %1785 = vmatpush2.bf16.msra.mxu0 0
    %1786 = vmatprep.subr.bf16.mxu0 0
    %1787 = vmatpush2.bf16.msra.mxu0 0
    %1788 = vmatprep.subr.bf16.mxu0 0
    %1789 = vmatpush2.bf16.msra.mxu0 0
    %1790 = vmatprep.mubr.bf16.mxu0 0
    %1791 = vmatmul.mubr.bf16.gmra.mxu0 %v1753
    %v1792 = vpop.f32.mrf.mxu0
    %v1793 = vadd.f32 %v1738, %v1792
    %v1794 = vpop.f32.mrf.mxu0
    %v1795 = vpop.f32.mrf.mxu0
    %v1796 = vadd.f32 %v1738, %v1795
    %v1797 = vpop.f32.mrf.mxu0
    %1798 = vmatprep.mubr.bf16.mxu0 0
    %1799 = vmatmul.mubr.bf16.gmra.mxu0 %v1756
    %v1800 = vpop.f32.mrf.mxu0
    %v1801 = vadd.f32 %v1738, %v1800
    %v1802 = vpop.f32.mrf.mxu0
    %v1803 = vpop.f32.mrf.mxu0
    %v1804 = vadd.f32 %v1738, %v1803
    %v1805 = vpop.f32.mrf.mxu0
    %1806 = vdwg.mxu0
    %v1807 = vmul.f32 %v1793, 0.5
    %v1808 = vmul.f32 %v1796, 0.5
    %v1809 = vmul.f32 %v1801, 0.5
    %v1810 = vmul.f32 %v1804, 0.5
    %v1811 = vmul.f32 %v1793, 0.70710677
    %v1812 = vmul.f32 %v1796, 0.70710677
    %v1813 = vmul.f32 %v1801, 0.70710677
    %v1814 = vmul.f32 %v1804, 0.70710677
    %vm1815 = vcmp.ge.f32.partialorder %v1811, 0.0
    %vm1816 = vcmp.ge.f32.partialorder %v1812, 0.0
    %vm1817 = vcmp.ge.f32.partialorder %v1813, 0.0
    %vm1818 = vcmp.ge.f32.partialorder %v1814, 0.0
    %v1819 = vsel %vm1815, 1.0, -1.0
    %v1820 = vsel %vm1816, 1.0, -1.0
    %v1821 = vsel %vm1817, 1.0, -1.0
    %v1822 = vsel %vm1818, 1.0, -1.0
    %v1823 = vand.u32 2147483647, %v1811
    %v1824 = vand.u32 2147483647, %v1812
    %v1825 = vand.u32 2147483647, %v1813
    %v1826 = vand.u32 2147483647, %v1814
    %v1827 = vmul.f32 %v1823, 0.3275911
    %v1828 = vmul.f32 %v1824, 0.3275911
    %v1829 = vmul.f32 %v1825, 0.3275911
    %v1830 = vmul.f32 %v1826, 0.3275911
    %v1831 = vadd.f32 %v1827, 1.0
    %v1832 = vadd.f32 %v1828, 1.0
    %v1833 = vadd.f32 %v1829, 1.0
    %v1834 = vadd.f32 %v1830, 1.0
    %v1835 = vrcp.pop %v1831
    %v1836 = vrcp.pop %v1832
    %v1837 = vrcp.pop %v1833
    %v1838 = vrcp.pop %v1834
    %v1839 = vmul.f32 %v1835, 1.0614054
    %v1840 = vmul.f32 %v1836, 1.0614054
    %v1841 = vmul.f32 %v1837, 1.0614054
    %v1842 = vmul.f32 %v1838, 1.0614054
    %v1843 = vadd.f32 %v1839, -1.4531521
    %v1844 = vadd.f32 %v1840, -1.4531521
    %v1845 = vadd.f32 %v1841, -1.4531521
    %v1846 = vadd.f32 %v1842, -1.4531521
    %v1847 = vmul.f32 %v1843, %v1835
    %v1848 = vmul.f32 %v1844, %v1836
    %v1849 = vmul.f32 %v1845, %v1837
    %v1850 = vmul.f32 %v1846, %v1838
    %v1851 = vadd.f32 %v1847, 1.4214138
    %v1852 = vadd.f32 %v1848, 1.4214138
    %v1853 = vadd.f32 %v1849, 1.4214138
    %v1854 = vadd.f32 %v1850, 1.4214138
    %v1855 = vmul.f32 %v1851, %v1835
    %v1856 = vmul.f32 %v1852, %v1836
    %v1857 = vmul.f32 %v1853, %v1837
    %v1858 = vmul.f32 %v1854, %v1838
    %v1859 = vadd.f32 %v1855, -0.28449672
    %v1860 = vadd.f32 %v1856, -0.28449672
    %v1861 = vadd.f32 %v1857, -0.28449672
    %v1862 = vadd.f32 %v1858, -0.28449672
    %v1863 = vmul.f32 %v1859, %v1835
    %v1864 = vmul.f32 %v1860, %v1836
    %v1865 = vmul.f32 %v1861, %v1837
    %v1866 = vmul.f32 %v1862, %v1838
    %v1867 = vadd.f32 %v1863, 0.2548296
    %v1868 = vadd.f32 %v1864, 0.2548296
    %v1869 = vadd.f32 %v1865, 0.2548296
    %v1870 = vadd.f32 %v1866, 0.2548296
    %v1871 = vmul.f32 %v1867, %v1835
    %v1872 = vmul.f32 %v1868, %v1836
    %v1873 = vmul.f32 %v1869, %v1837
    %v1874 = vmul.f32 %v1870, %v1838
    %v1875 = vsub.f32 0.0, %v1823
    %v1876 = vsub.f32 0.0, %v1824
    %v1877 = vsub.f32 0.0, %v1825
    %v1878 = vsub.f32 0.0, %v1826
    %v1879 = vmul.f32 %v1875, %v1823
    %v1880 = vmul.f32 %v1876, %v1824
    %v1881 = vmul.f32 %v1877, %v1825
    %v1882 = vmul.f32 %v1878, %v1826
    %v1883 = vmul.f32 %v1879, 1.442695
    %v1884 = vpow.pop %v1883
    %v1885 = vmul.f32 %v1880, 1.442695
    %v1886 = vpow.pop %v1885
    %v1887 = vmul.f32 %v1881, 1.442695
    %v1888 = vpow.pop %v1887
    %v1889 = vmul.f32 %v1882, 1.442695
    %v1890 = vpow.pop %v1889
    %v1891 = vmul.f32 %v1871, %v1884
    %v1892 = vmul.f32 %v1872, %v1886
    %v1893 = vmul.f32 %v1873, %v1888
    %v1894 = vmul.f32 %v1874, %v1890
    %v1895 = vsub.f32 1.0, %v1891
    %v1896 = vsub.f32 1.0, %v1892
    %v1897 = vsub.f32 1.0, %v1893
    %v1898 = vsub.f32 1.0, %v1894
    %v1899 = vmul.f32 %v1819, %v1895
    %v1900 = vmul.f32 %v1820, %v1896
    %v1901 = vmul.f32 %v1821, %v1897
    %v1902 = vmul.f32 %v1822, %v1898
    %v1903 = vadd.f32 %v1899, 1.0
    %v1904 = vadd.f32 %v1900, 1.0
    %v1905 = vadd.f32 %v1901, 1.0
    %v1906 = vadd.f32 %v1902, 1.0
    %v1907 = vmul.f32 %v1807, %v1903
    %v1908 = vmul.f32 %v1808, %v1904
    %v1909 = vmul.f32 %v1809, %v1905
    %v1910 = vmul.f32 %v1810, %v1906
    %v1911 = vpack.c.bf16 %v1908, %v1907
    %v1912 = vpack.c.bf16 %v1910, %v1909
    %v1913 = vld [vmem:[%s13] sm:$0xf]
    %v1914 = vld [vmem:[%s13 + $0x4] sm:$0xf]
    %v1915 = vld [vmem:[%s13 + $0x8] sm:$0xf]
    %v1916 = vld [vmem:[%s13 + $0xc] sm:$0xf]
    %v1917 = vld [vmem:[%s13 + $0x10] sm:$0xf]
    %v1918 = vld [vmem:[%s13 + $0x14] sm:$0xf]
    %v1919 = vld [vmem:[%s13 + $0x18] sm:$0xf]
    %v1920 = vld [vmem:[%s13 + $0x1c] sm:$0xf]
    %v1921 = vld [vmem:[%s13 + $0x20] sm:$0xf]
    %v1922 = vld [vmem:[%s13 + $0x24] sm:$0xf]
    %v1923 = vld [vmem:[%s13 + $0x28] sm:$0xf]
    %v1924 = vld [vmem:[%s13 + $0x2c] sm:$0xf]
    %v1925 = vld [vmem:[%s13 + $0x30] sm:$0xf]
    %v1926 = vld [vmem:[%s13 + $0x34] sm:$0xf]
    %v1927 = vld [vmem:[%s13 + $0x38] sm:$0xf]
    %v1928 = vld [vmem:[%s13 + $0x3c] sm:$0xf]
    %v1929 = vld [vmem:[%s14] sm:$0x1]
    %v1931 = vlaneseq
    %v1932 = vshrl.u32 %v1931, 7
    %v1933 = vsub.s32 0, %v1932
    %v1934 = vrot.slane %v1929, %v1933
    %v1952 = vunpack.c.l.b16 %v1913
    %v1953 = vunpack.c.l.b16 %v1914
    %v1954 = vunpack.c.l.b16 %v1915
    %v1955 = vunpack.c.l.b16 %v1916
    %v1956 = vunpack.c.l.b16 %v1917
    %v1957 = vunpack.c.l.b16 %v1918
    %v1958 = vunpack.c.l.b16 %v1919
    %v1959 = vunpack.c.l.b16 %v1920
    %v1960 = vunpack.c.l.b16 %v1921
    %v1961 = vunpack.c.l.b16 %v1922
    %v1962 = vunpack.c.l.b16 %v1923
    %v1963 = vunpack.c.l.b16 %v1924
    %v1964 = vunpack.c.l.b16 %v1925
    %v1965 = vunpack.c.l.b16 %v1926
    %v1966 = vunpack.c.l.b16 %v1927
    %v1967 = vunpack.c.l.b16 %v1928
    %v1968 = vpack.c.b16 %v1953, %v1952
    %v1969 = vpack.c.b16 %v1955, %v1954
    %v1970 = vpack.c.b16 %v1957, %v1956
    %v1971 = vpack.c.b16 %v1959, %v1958
    %v1972 = vpack.c.b16 %v1961, %v1960
    %v1973 = vpack.c.b16 %v1963, %v1962
    %v1974 = vpack.c.b16 %v1965, %v1964
    %v1975 = vpack.c.b16 %v1967, %v1966
    %1984 = vmatprep.subr.bf16.mxu0 0
    %1985 = vmatpush1.bf16.msra.mxu0 %v1975
    %1986 = vmatprep.subr.bf16.mxu0 0
    %1987 = vmatpush1.bf16.msra.mxu0 %v1974
    %1988 = vmatprep.subr.bf16.mxu0 0
    %1989 = vmatpush1.bf16.msra.mxu0 %v1973
    %1990 = vmatprep.subr.bf16.mxu0 0
    %1991 = vmatpush1.bf16.msra.mxu0 %v1972
    %1992 = vmatprep.subr.bf16.mxu0 0
    %1993 = vmatpush1.bf16.msra.mxu0 %v1971
    %1994 = vmatprep.subr.bf16.mxu0 0
    %1995 = vmatpush1.bf16.msra.mxu0 %v1970
    %1996 = vmatprep.subr.bf16.mxu0 0
    %1997 = vmatpush1.bf16.msra.mxu0 %v1969
    %1998 = vmatprep.subr.bf16.mxu0 0
    %1999 = vmatpush1.bf16.msra.mxu0 %v1968
    %2000 = vmatprep.subr.bf16.mxu0 0
    %2001 = vmatpush2.bf16.msra.mxu0 0
    %2002 = vmatprep.subr.bf16.mxu0 0
    %2003 = vmatpush2.bf16.msra.mxu0 0
    %2004 = vmatprep.subr.bf16.mxu0 0
    %2005 = vmatpush2.bf16.msra.mxu0 0
    %2006 = vmatprep.subr.bf16.mxu0 0
    %2007 = vmatpush2.bf16.msra.mxu0 0
    %2008 = vmatprep.subr.bf16.mxu0 0
    %2009 = vmatpush2.bf16.msra.mxu0 0
    %2010 = vmatprep.subr.bf16.mxu0 0
    %2011 = vmatpush2.bf16.msra.mxu0 0
    %2012 = vmatprep.subr.bf16.mxu0 0
    %2013 = vmatpush2.bf16.msra.mxu0 0
    %2014 = vmatprep.subr.bf16.mxu0 0
    %2015 = vmatpush2.bf16.msra.mxu0 0
    %2016 = vmatprep.mubr.bf16.mxu0 0
    %2017 = vmatmul.mubr.bf16.gmra.mxu0 %v1911
    %v2018 = vpop.f32.mrf.mxu0
    %v2019 = vadd.f32 %v1934, %v2018
    %v2020 = vpop.f32.mrf.mxu0
    %v2021 = vpop.f32.mrf.mxu0
    %v2022 = vadd.f32 %v1934, %v2021
    %v2023 = vpop.f32.mrf.mxu0
    %2024 = vmatprep.mubr.bf16.mxu0 0
    %2025 = vmatmul.mubr.bf16.gmra.mxu0 %v1912
    %v2026 = vpop.f32.mrf.mxu0
    %v2027 = vadd.f32 %v1934, %v2026
    %v2028 = vpop.f32.mrf.mxu0
    %v2029 = vpop.f32.mrf.mxu0
    %v2030 = vadd.f32 %v1934, %v2029
    %v2031 = vpop.f32.mrf.mxu0
    %2032 = vdwg.mxu0
    %v2033 = vadd.f32 %v1649, %v2019
    %v2034 = vadd.f32 %v1650, %v2022
    %v2035 = vadd.f32 %v1651, %v2027
    %v2036 = vadd.f32 %v1652, %v2030
    %2037 = vst.msk [vmem:[#allocation11] sm:$0xff] %vm126, %v2033
    %2038 = vst.msk [vmem:[#allocation11 + $0x8] sm:$0xff] %vm126, %v2034
    %2039 = vst.msk [vmem:[#allocation11 + $0x10] sm:$0xff] %vm126, %v2035
    %2040 = vst.msk [vmem:[#allocation11 + $0x18] sm:$0xff] %vm126, %v2036
    // Predicated region
    $region82: #{tpu_custom_call.1} parent=1 // pred_check
      _
    $region83: #{tpu_custom_call.1} parent=1 // pred_check_branch
      %2042 = sbr.rel (0) target = $region85
    $region84: #{tpu_custom_call.1} parent=1 // pred_region
      %s2044 = ssub.s32 512, 512
      %2045 = vsyncadd [#allocation4], %s2044
      %s2046 = sshll.u32 [#allocation11], 4
      %s2047 = int_to_ptr.vmem [resolvable:$true] %s2046
      %2052 = dma.vmem_to_hbm [thread:$0]  %s2047, 512, %s15, [#allocation4], 128, 128, 8
    $region85: #{tpu_custom_call.1} parent=1 // pred_fallthru
      _
    // Predicated region
    $region86: #{tpu_custom_call.1} parent=1 // pred_check
      _
    $region87: #{tpu_custom_call.1} parent=1 // pred_check_branch
      %2054 = sbr.rel (0) target = $region89
    $region88: #{tpu_custom_call.1} parent=1 // pred_region
      %2055 = dma.done [#allocation4], 512
    $region89: #{tpu_custom_call.1} parent=1 // pred_fallthru
      _
    %2056 = vsyncpa [#allocation3], 1
    %2057 = vsyncpa [#allocation6], 1
    %2058 = vsyncpa [#allocation9], 1
    %2059 = vsyncpa [#allocation4], 1

</llo_original>
